<compile_context>
chip_gen: v6e
topology: v6e:2x2x1
jax: 0.10.0
libtpu: 0.0.40
codegen_flags: <defaults>
</compile_context>

<pallas_src>
import jax
import jax.numpy as jnp
from jax.experimental import pallas as pl
from jax.experimental.pallas import tpu as pltpu


def _make_coattention_kernel(C, P, P_pad):
    needs_mask = (P_pad != P)

    def kernel(xq_ref, xr_ref, wq_ref, wk_ref, out_ref, k_ref, v_ref):
        # xq_ref : (1, 1, C+1, tq)    query-pixel tile (channel-major, ones row at C)
        # xr_ref : (1, 1, C+1, P_pad) full reference image (+ ones row)
        # wq/wk  : (C+1, Hd)          1x1-conv weights, bias folded into row C
        # out_ref: (1, 1, 2C, tq)     [query passthrough ; attended]
        # k_ref  : (Hd, P_pad) bf16   hoisted K projection   (persistent scratch)
        # v_ref  : (C+1, P_pad) bf16  hoisted [V ; ones] slab (persistent scratch)
        dn = (((0,), (0,)), ((), ()))          # contract dim 0 of both operands

        # ---- (direction, batch)-invariant work: only on the first query tile.
        @pl.when(pl.program_id(2) == 0)
        def _():
            xr = xr_ref[0, 0]                                            # (C+1, P_pad) f32
            k = jax.lax.dot_general(wk_ref[...], xr, dn,
                                    preferred_element_type=jnp.float32)  # (Hd, P_pad)
            k_ref[...] = k.astype(k_ref.dtype)
            v_ref[...] = xr.astype(v_ref.dtype)

        xq = xq_ref[0, 0]                                                # (C+1, tq) f32
        q = jax.lax.dot_general(wq_ref[...], xq, dn,
                                preferred_element_type=jnp.float32)      # (Hd, tq)

        # scores[p_ref, p_query]; bf16 MXU operands, f32 accumulation.
        s = jax.lax.dot_general(k_ref[...], q.astype(jnp.bfloat16), dn,
                                preferred_element_type=jnp.float32)      # (P_pad, tq)

        # Softmax over reference pixels (axis 0), normalization deferred past AV.
        s = s - jnp.max(s, axis=0, keepdims=True)
        # TODO(synk): on v6e/v7x run the exp in bf16 (EUP bf16 path); kept f32
        # here (then cast) so the element-wise chain stays f32 on v5e.
        e = jnp.exp(s).astype(jnp.bfloat16)                              # (P_pad, tq)
        if needs_mask:
            valid = jax.lax.broadcasted_iota(jnp.int32, (P_pad, 1), 0) < P
            e = jnp.where(valid, e, jnp.zeros_like(e))

        # [V ; 1] @ e : rows [0, C) = attended numerator, row C = softmax denom.
        av = jnp.dot(v_ref[...], e, preferred_element_type=jnp.float32)  # (C+1, tq)
        l = av[C:, :]                                                    # (1, tq)
        r = pl.reciprocal(l, approx=True)
        r = r * (2.0 - l * r)        # one Newton step -> near-f32 accuracy, ~free

        out_ref[0, 0, :C, :] = xq[:C, :].astype(out_ref.dtype)
        out_ref[0, 0, C:, :] = (av[:C, :] * r).astype(out_ref.dtype)

    return kernel


def _pick_tq(P_pad, C, Hd, budget_bytes):
    """Largest 128-multiple divisor of P_pad whose live set fits the budget."""
    best = 128
    for t in range(128, P_pad + 1, 128):
        if P_pad % t:
            continue
        need = (
            P_pad * t * (4 + 2)                 # f32 score tile + bf16 exp tile
            + 2 * (C + 1) * t * 4               # double-buffered query window
            + 2 * 2 * C * t * 4                 # double-buffered output window
            + 2 * (C + 1) * P_pad * 4           # reference window (revisited)
            + (Hd + C + 1) * P_pad * 2          # persistent bf16 K / [V;1] scratch
        )
        if need <= budget_bytes:
            best = t
    return best


def coattention_module(left, right, params, *, vmem_budget_bytes=40 * 1024 * 1024):
    """CoAttentionModule.forward (attention_type='coam', shared layer).

    left, right : (B, C, H, W) float32
    params["wq"/"wk"] : (C, Hd) 1x1-conv weights (pre-transposed, C_in major)
    params["bq"/"bk"] : (Hd,)
    returns (left_attended, right_attended), each (B, 2C, H, W).
    """
    B, C, H, W = left.shape
    P = H * W
    wq, wk = params["wq"], params["wk"]
    Hd = wq.shape[1]

    # Fold biases into the weights via an appended ones channel.
    wq_ext = jnp.concatenate([wq, params["bq"][None, :]], axis=0)   # (C+1, Hd)
    wk_ext = jnp.concatenate([wk, params["bk"][None, :]], axis=0)   # (C+1, Hd)

    # NCHW -> channel-major (C, P) is a pure reshape; append the ones channel
    # (bias + folded row-sum) and pad pixels to a multiple of 128 lanes.
    P_pad = ((P + 127) // 128) * 128

    def prep(x):
        x = x.reshape(B, C, P)
        x = jnp.concatenate([x, jnp.ones((B, 1, P), x.dtype)], axis=1)  # (B, C+1, P)
        if P_pad != P:
            x = jnp.pad(x, ((0, 0), (0, 0), (0, P_pad - P)))
        return x

    feats = jnp.stack([prep(left), prep(right)], axis=0)   # (2, B, C+1, P_pad)

    tq = _pick_tq(P_pad, C, Hd, vmem_budget_bytes)
    nq = P_pad // tq

    kernel = _make_coattention_kernel(C, P, P_pad)

    out = pl.pallas_call(
        kernel,
        out_shape=jax.ShapeDtypeStruct((2, B, 2 * C, P_pad), jnp.float32),
        grid_spec=pltpu.PrefetchScalarGridSpec(
            num_scalar_prefetch=0,
            grid=(2, B, nq),                                   # direction, batch, query tile
            in_specs=[
                pl.BlockSpec((1, 1, C + 1, tq), lambda d, b, i: (d, b, 0, i)),       # query
                pl.BlockSpec((1, 1, C + 1, P_pad), lambda d, b, i: (1 - d, b, 0, 0)),  # reference
                pl.BlockSpec((C + 1, Hd), lambda d, b, i: (0, 0)),                   # Wq (+bq)
                pl.BlockSpec((C + 1, Hd), lambda d, b, i: (0, 0)),                   # Wk (+bk)
            ],
            out_specs=pl.BlockSpec((1, 1, 2 * C, tq), lambda d, b, i: (d, b, 0, i)),
            scratch_shapes=[
                pltpu.VMEM((Hd, P_pad), jnp.bfloat16),      # hoisted K projection
                pltpu.VMEM((C + 1, P_pad), jnp.bfloat16),   # hoisted [V ; ones]
            ],
        ),
        compiler_params=pltpu.CompilerParams(
            # i must be "arbitrary": the scratch init at i==0 must run on the
            # core that executes the rest of that (d, b)'s query tiles.
            dimension_semantics=("parallel", "parallel", "arbitrary"),
            vmem_limit_bytes=48 * 1024 * 1024),
    )(feats, feats, wq_ext, wk_ext)

    out = out[..., :P]                       # drop padded query pixels (no-op if P%128==0)
    left_attended = out[0].reshape(B, 2 * C, H, W)
    right_attended = out[1].reshape(B, 2 * C, H, W)
    return left_attended, right_attended


def _reference_coattention_layer(xq, xr, wq, bq, wk, bk):
    """Pure-JAX reference mirroring the PyTorch einsum path (NCHW)."""
    B, C, H, W = xq.shape
    Q = jnp.einsum('bchw,co->bohw', xq, wq) + bq[None, :, None, None]
    K = jnp.einsum('bchw,co->bohw', xr, wk) + bk[None, :, None, None]
    V = xr.reshape(B, C, H * W)
    A = jnp.einsum('bcij,bckl->bijkl', Q, K).reshape(B, H, W, H * W)
    A = jax.nn.softmax(A, axis=3)
    return jnp.einsum('bijp,bcp->bcij', A, V).reshape(B, C, H, W)


if __name__ == "__main__":
    # Small shapes consistent with the module: batch=2, channels=8, hidden=32,
    # spatial 16x16 (P=256; the tq picker selects tq=P so the grid is 4 steps).
    B, C, Hd, H, W = 2, 8, 32, 16, 16

    key = jax.random.PRNGKey(0)
    k_l, k_r, k_wq, k_bq, k_wk, k_bk = jax.random.split(key, 6)

    left = jax.random.normal(k_l, (B, C, H, W), dtype=jnp.float32)
    right = jax.random.normal(k_r, (B, C, H, W), dtype=jnp.float32)

    # Conv2d(C, Hd, 1) weights, stored pre-transposed as (C_in, Hd).
    params = {
        "wq": jax.random.normal(k_wq, (C, Hd), dtype=jnp.float32) * 0.05,
        "bq": jax.random.normal(k_bq, (Hd,), dtype=jnp.float32) * 0.05,
        "wk": jax.random.normal(k_wk, (C, Hd), dtype=jnp.float32) * 0.05,
        "bk": jax.random.normal(k_bk, (Hd,), dtype=jnp.float32) * 0.05,
    }

    left_att, right_att = jax.jit(coattention_module)(left, right, params)
    jax.block_until_ready((left_att, right_att))

    assert left_att.shape == (B, 2 * C, H, W)
    assert right_att.shape == (B, 2 * C, H, W)

    # Numerical check against the pure-JAX einsum reference.
    ref_wr = _reference_coattention_layer(left, right, params["wq"], params["bq"],
                                          params["wk"], params["bk"])
    ref_wl = _reference_coattention_layer(right, left, params["wq"], params["bq"],
                                          params["wk"], params["bk"])
    ref_left = jnp.concatenate((left, ref_wr), axis=1)
    ref_right = jnp.concatenate((right, ref_wl), axis=1)
    # Tolerance covers the bf16 MXU operands (f32 accumulation); the softmax
    # denominator reciprocal is Newton-refined back to ~f32 accuracy.
    assert jnp.allclose(left_att, ref_left, atol=2e-3, rtol=2e-3)
    assert jnp.allclose(right_att, ref_right, atol=2e-3, rtol=2e-3)

    print("KERNEL_OK")
</pallas_src>

<mosaic_0001>
module attributes {stable_mosaic.version = 11 : i64} {
  func.func @kernel(%arg0: i32, %arg1: i32, %arg2: i32, %arg3: memref<1x1x9x256xf32, #tpu.memory_space<vmem>>, %arg4: memref<1x1x9x256xf32, #tpu.memory_space<vmem>>, %arg5: memref<9x32xf32, #tpu.memory_space<vmem>>, %arg6: memref<9x32xf32, #tpu.memory_space<vmem>>, %arg7: memref<1x1x16x256xf32, #tpu.memory_space<vmem>>, %arg8: memref<32x256xbf16, #tpu.memory_space<vmem>>, %arg9: memref<9x256xbf16, #tpu.memory_space<vmem>>) attributes {dimension_semantics = [#tpu.dimension_semantics<parallel>, #tpu.dimension_semantics<parallel>, #tpu.dimension_semantics<arbitrary>], iteration_bounds = array<i64: 2, 2, 1>, scalar_prefetch = 0 : i64, scratch_operands = 2 : i64, tpu.core_type = #tpu.core_type<tc>, window_params = [{transform_indices = @transform_0, window_bounds = array<i64: 1, 1, 9, 256>}, {transform_indices = @transform_1, window_bounds = array<i64: 1, 1, 9, 256>}, {pipeline_mode = #tpu.pipeline_mode<synchronous>, transform_indices = @transform_2, window_bounds = array<i64: 9, 32>}, {pipeline_mode = #tpu.pipeline_mode<synchronous>, transform_indices = @transform_3, window_bounds = array<i64: 9, 32>}, {transform_indices = @transform_4, window_bounds = array<i64: 1, 1, 16, 256>}]} {
    %c0_i32 = arith.constant 0 : i32
    %0 = arith.cmpi eq, %arg2, %c0_i32 : i32
    %1 = arith.extui %0 : i1 to i32
    %c0_i32_0 = arith.constant 0 : i32
    %2 = arith.cmpi ne, %1, %c0_i32_0 : i32
    scf.if %2 {
      %c0_21 = arith.constant 0 : index
      %c0_22 = arith.constant 0 : index
      %c0_23 = arith.constant 0 : index
      %c0_24 = arith.constant 0 : index
      %34 = vector.load %arg4[%c0_21, %c0_22, %c0_23, %c0_24] : memref<1x1x9x256xf32, #tpu.memory_space<vmem>>, vector<1x1x9x256xf32>
      %35 = vector.shape_cast %34 : vector<1x1x9x256xf32> to vector<9x256xf32>
      %c0_25 = arith.constant 0 : index
      %c0_26 = arith.constant 0 : index
      %36 = vector.load %arg6[%c0_25, %c0_26] : memref<9x32xf32, #tpu.memory_space<vmem>>, vector<9x32xf32>
      %cst_27 = arith.constant dense<0.000000e+00> : vector<32x256xf32>
      %37 = tpu.matmul %36, %35, %cst_27 {dimension_numbers = #tpu.dot_dimension_numbers<[0], [0], [1], [1], [0, 1, 1, 1], [], []>} : vector<9x32xf32>, vector<9x256xf32>, vector<32x256xf32> -> vector<32x256xf32>
      %38 = arith.truncf %37 : vector<32x256xf32> to vector<32x256xbf16>
      %c0_28 = arith.constant 0 : index
      %c0_29 = arith.constant 0 : index
      %39 = vector.load %arg8[%c0_28, %c0_29] : memref<32x256xbf16, #tpu.memory_space<vmem>>, vector<32x256xbf16>
      tpu.vector_store %arg8[%c0_28, %c0_29], %38 {strides = array<i32>} : memref<32x256xbf16, #tpu.memory_space<vmem>>, vector<32x256xbf16>,
      %40 = arith.truncf %35 : vector<9x256xf32> to vector<9x256xbf16>
      %c0_30 = arith.constant 0 : index
      %c0_31 = arith.constant 0 : index
      %41 = vector.load %arg9[%c0_30, %c0_31] : memref<9x256xbf16, #tpu.memory_space<vmem>>, vector<9x256xbf16>
      tpu.vector_store %arg9[%c0_30, %c0_31], %40 {strides = array<i32>} : memref<9x256xbf16, #tpu.memory_space<vmem>>, vector<9x256xbf16>,
    } else {
    }
    %c0 = arith.constant 0 : index
    %c0_1 = arith.constant 0 : index
    %c0_2 = arith.constant 0 : index
    %c0_3 = arith.constant 0 : index
    %3 = vector.load %arg3[%c0, %c0_1, %c0_2, %c0_3] : memref<1x1x9x256xf32, #tpu.memory_space<vmem>>, vector<1x1x9x256xf32>
    %4 = vector.shape_cast %3 : vector<1x1x9x256xf32> to vector<9x256xf32>
    %c0_4 = arith.constant 0 : index
    %c0_5 = arith.constant 0 : index
    %5 = vector.load %arg5[%c0_4, %c0_5] : memref<9x32xf32, #tpu.memory_space<vmem>>, vector<9x32xf32>
    %cst = arith.constant dense<0.000000e+00> : vector<32x256xf32>
    %6 = tpu.matmul %5, %4, %cst {dimension_numbers = #tpu.dot_dimension_numbers<[0], [0], [1], [1], [0, 1, 1, 1], [], []>} : vector<9x32xf32>, vector<9x256xf32>, vector<32x256xf32> -> vector<32x256xf32>
    %c0_6 = arith.constant 0 : index
    %c0_7 = arith.constant 0 : index
    %7 = vector.load %arg8[%c0_6, %c0_7] : memref<32x256xbf16, #tpu.memory_space<vmem>>, vector<32x256xbf16>
    %8 = arith.truncf %6 : vector<32x256xf32> to vector<32x256xbf16>
    %cst_8 = arith.constant dense<0.000000e+00> : vector<256x256xf32>
    %9 = tpu.matmul %7, %8, %cst_8 {dimension_numbers = #tpu.dot_dimension_numbers<[0], [0], [1], [1], [0, 1, 1, 1], [], []>} : vector<32x256xbf16>, vector<32x256xbf16>, vector<256x256xf32> -> vector<256x256xf32>
    %cst_9 = arith.constant dense<0xFF800000> : vector<256xf32>
    %10 = vector.multi_reduction <maximumf>, %9, %cst_9 [0] : vector<256x256xf32> to vector<256xf32>
    %11 = vector.shape_cast %10 : vector<256xf32> to vector<1x256xf32>
    %12 = vector.broadcast %11 : vector<1x256xf32> to vector<256x256xf32>
    %13 = arith.subf %9, %12 : vector<256x256xf32>
    %14 = math.exp %13 : vector<256x256xf32>
    %15 = arith.truncf %14 : vector<256x256xf32> to vector<256x256xbf16>
    %c0_10 = arith.constant 0 : index
    %c0_11 = arith.constant 0 : index
    %16 = vector.load %arg9[%c0_10, %c0_11] : memref<9x256xbf16, #tpu.memory_space<vmem>>, vector<9x256xbf16>
    %cst_12 = arith.constant dense<0.000000e+00> : vector<9x256xf32>
    %17 = tpu.matmul %16, %15, %cst_12 {dimension_numbers = #tpu.dot_dimension_numbers<[1], [0], [0], [1], [0, 0, 1, 1], [], []>} : vector<9x256xbf16>, vector<256x256xbf16>, vector<9x256xf32> -> vector<9x256xf32>
    %18 = vector.extract_strided_slice %17 {offsets = [8, 0], sizes = [1, 256], strides = [1, 1]} : vector<9x256xf32> to vector<1x256xf32>
    %19 = tpu.reciprocal %18 {approx = true} : vector<1x256xf32> -> vector<1x256xf32>
    %20 = arith.mulf %18, %19 : vector<1x256xf32>
    %cst_13 = arith.constant 2.000000e+00 : f32
    %21 = vector.broadcast %cst_13 : f32 to vector<1x256xf32>
    %22 = arith.subf %21, %20 : vector<1x256xf32>
    %23 = arith.mulf %19, %22 : vector<1x256xf32>
    %24 = vector.extract_strided_slice %4 {offsets = [0, 0], sizes = [8, 256], strides = [1, 1]} : vector<9x256xf32> to vector<8x256xf32>
    %c0_14 = arith.constant 0 : index
    %c0_15 = arith.constant 0 : index
    %c0_16 = arith.constant 0 : index
    %c0_17 = arith.constant 0 : index
    %25 = vector.load %arg7[%c0_14, %c0_15, %c0_16, %c0_17] : memref<1x1x16x256xf32, #tpu.memory_space<vmem>>, vector<1x1x8x256xf32>
    %26 = vector.shape_cast %25 : vector<1x1x8x256xf32> to vector<8x256xf32>
    %27 = vector.shape_cast %24 : vector<8x256xf32> to vector<1x1x8x256xf32>
    tpu.vector_store %arg7[%c0_14, %c0_15, %c0_16, %c0_17], %27 {strides = array<i32>} : memref<1x1x16x256xf32, #tpu.memory_space<vmem>>, vector<1x1x8x256xf32>,
    %28 = vector.extract_strided_slice %17 {offsets = [0, 0], sizes = [8, 256], strides = [1, 1]} : vector<9x256xf32> to vector<8x256xf32>
    %29 = vector.broadcast %23 : vector<1x256xf32> to vector<8x256xf32>
    %30 = arith.mulf %28, %29 : vector<8x256xf32>
    %c0_18 = arith.constant 0 : index
    %c0_19 = arith.constant 0 : index
    %c8 = arith.constant 8 : index
    %c0_20 = arith.constant 0 : index
    %31 = vector.load %arg7[%c0_18, %c0_19, %c8, %c0_20] : memref<1x1x16x256xf32, #tpu.memory_space<vmem>>, vector<1x1x8x256xf32>
    %32 = vector.shape_cast %31 : vector<1x1x8x256xf32> to vector<8x256xf32>
    %33 = vector.shape_cast %30 : vector<8x256xf32> to vector<1x1x8x256xf32>
    tpu.vector_store %arg7[%c0_18, %c0_19, %c8, %c0_20], %33 {strides = array<i32>} : memref<1x1x16x256xf32, #tpu.memory_space<vmem>>, vector<1x1x8x256xf32>,
    return
  }
  func.func @transform_0(%arg0: i32, %arg1: i32, %arg2: i32) -> (i32, i32, i32, i32) {
    %c0_i32 = arith.constant 0 : i32
    %c0_i32_0 = arith.constant 0 : i32
    return %arg0, %arg1, %c0_i32, %arg2 : i32, i32, i32, i32
  }
  func.func @transform_1(%arg0: i32, %arg1: i32, %arg2: i32) -> (i32, i32, i32, i32) {
    %c1_i32 = arith.constant 1 : i32
    %0 = arith.subi %c1_i32, %arg0 : i32
    %c0_i32 = arith.constant 0 : i32
    %c0_i32_0 = arith.constant 0 : i32
    %c0_i32_1 = arith.constant 0 : i32
    return %0, %arg1, %c0_i32, %c0_i32_0 : i32, i32, i32, i32
  }
  func.func @transform_2(%arg0: i32, %arg1: i32, %arg2: i32) -> (i32, i32) {
    %c0_i32 = arith.constant 0 : i32
    %c0_i32_0 = arith.constant 0 : i32
    %c0_i32_1 = arith.constant 0 : i32
    return %c0_i32, %c0_i32_0 : i32, i32
  }
  func.func @transform_3(%arg0: i32, %arg1: i32, %arg2: i32) -> (i32, i32) {
    %c0_i32 = arith.constant 0 : i32
    %c0_i32_0 = arith.constant 0 : i32
    %c0_i32_1 = arith.constant 0 : i32
    return %c0_i32, %c0_i32_0 : i32, i32
  }
  func.func @transform_4(%arg0: i32, %arg1: i32, %arg2: i32) -> (i32, i32, i32, i32) {
    %c0_i32 = arith.constant 0 : i32
    %c0_i32_0 = arith.constant 0 : i32
    return %arg0, %arg1, %c0_i32, %arg2 : i32, i32, i32, i32
  }
}

</mosaic_0001>

<llo_original>
// kernel: squeeze.3
$region0: #{squeeze.3}
  %s0 = inlined_call_operand.vmem [shape: f32[1,2,16,256], index: 0, kind: input, shape index: {}]
  %s1 = inlined_call_operand.hbm [shape: f32[2,16,16,16], index: 1, kind: output, shape index: {}]
  $region1: #{squeeze.3} parent=0
    #allocation0 [shape = 'u8[262144]{0}', space=vmem, size = 0x40000, scoped, tag = 'operand span for operand 1']
    #allocation1 [shape = 's32[1]{0}', space=sflag, size = 0x4, scoped, tag = 'scoped memory for squeeze.3']
    %2 = vsyncpa [#allocation1], 0
    %v3 = vld [vmem:[%s0] sm:$0xff]
    %vm4 = vcmask 130048
    %5 = vst.msk [vmem:[#allocation0] ss:$16 sm:$0x3] %vm4, %v3
    %6 = vst.msk [vmem:[#allocation0] ss:$16 sm:$0xc] %vm4, %v3
    %7 = vst.msk [vmem:[#allocation0] ss:$16 sm:$0x30] %vm4, %v3
    %8 = vst.msk [vmem:[#allocation0] ss:$16 sm:$0xc0] %vm4, %v3
    %s9 = scalar_lea.vmem %s0, 8
    %v10 = vld [vmem:[%s9] sm:$0xff]
    %vm11 = vcmask 130048
    %s12 = scalar_lea.vmem [#allocation0], 8
    %13 = vst.msk [vmem:[%s12] ss:$16 sm:$0x3] %vm11, %v10
    %s14 = scalar_lea.vmem [#allocation0], 8
    %15 = vst.msk [vmem:[%s14] ss:$16 sm:$0xc] %vm11, %v10
    %s16 = scalar_lea.vmem [#allocation0], 8
    %17 = vst.msk [vmem:[%s16] ss:$16 sm:$0x30] %vm11, %v10
    %s18 = scalar_lea.vmem [#allocation0], 8
    %19 = vst.msk [vmem:[%s18] ss:$16 sm:$0xc0] %vm11, %v10
    %s20 = scalar_lea.vmem %s0, 16
    %v21 = vld [vmem:[%s20] sm:$0xff]
    %vm22 = vcmask 130048
    %s23 = scalar_lea.vmem [#allocation0], 128
    %24 = vst.msk [vmem:[%s23] ss:$16 sm:$0x3] %vm22, %v21
    %s25 = scalar_lea.vmem [#allocation0], 128
    %26 = vst.msk [vmem:[%s25] ss:$16 sm:$0xc] %vm22, %v21
    %s27 = scalar_lea.vmem [#allocation0], 128
    %28 = vst.msk [vmem:[%s27] ss:$16 sm:$0x30] %vm22, %v21
    %s29 = scalar_lea.vmem [#allocation0], 128
    %30 = vst.msk [vmem:[%s29] ss:$16 sm:$0xc0] %vm22, %v21
    %s31 = scalar_lea.vmem %s0, 24
    %v32 = vld [vmem:[%s31] sm:$0xff]
    %vm33 = vcmask 130048
    %s34 = scalar_lea.vmem [#allocation0], 136
    %35 = vst.msk [vmem:[%s34] ss:$16 sm:$0x3] %vm33, %v32
    %s36 = scalar_lea.vmem [#allocation0], 136
    %37 = vst.msk [vmem:[%s36] ss:$16 sm:$0xc] %vm33, %v32
    %s38 = scalar_lea.vmem [#allocation0], 136
    %39 = vst.msk [vmem:[%s38] ss:$16 sm:$0x30] %vm33, %v32
    %s40 = scalar_lea.vmem [#allocation0], 136
    %41 = vst.msk [vmem:[%s40] ss:$16 sm:$0xc0] %vm33, %v32
    %s42 = scalar_lea.vmem %s0, 32
    %v43 = vld [vmem:[%s42] sm:$0xff]
    %vm44 = vcmask 130048
    %s45 = scalar_lea.vmem [#allocation0], 256
    %46 = vst.msk [vmem:[%s45] ss:$16 sm:$0x3] %vm44, %v43
    %s47 = scalar_lea.vmem [#allocation0], 256
    %48 = vst.msk [vmem:[%s47] ss:$16 sm:$0xc] %vm44, %v43
    %s49 = scalar_lea.vmem [#allocation0], 256
    %50 = vst.msk [vmem:[%s49] ss:$16 sm:$0x30] %vm44, %v43
    %s51 = scalar_lea.vmem [#allocation0], 256
    %52 = vst.msk [vmem:[%s51] ss:$16 sm:$0xc0] %vm44, %v43
    %s53 = scalar_lea.vmem %s0, 40
    %v54 = vld [vmem:[%s53] sm:$0xff]
    %vm55 = vcmask 130048
    %s56 = scalar_lea.vmem [#allocation0], 264
    %57 = vst.msk [vmem:[%s56] ss:$16 sm:$0x3] %vm55, %v54
    %s58 = scalar_lea.vmem [#allocation0], 264
    %59 = vst.msk [vmem:[%s58] ss:$16 sm:$0xc] %vm55, %v54
    %s60 = scalar_lea.vmem [#allocation0], 264
    %61 = vst.msk [vmem:[%s60] ss:$16 sm:$0x30] %vm55, %v54
    %s62 = scalar_lea.vmem [#allocation0], 264
    %63 = vst.msk [vmem:[%s62] ss:$16 sm:$0xc0] %vm55, %v54
    %s64 = scalar_lea.vmem %s0, 48
    %v65 = vld [vmem:[%s64] sm:$0xff]
    %vm66 = vcmask 130048
    %s67 = scalar_lea.vmem [#allocation0], 384
    %68 = vst.msk [vmem:[%s67] ss:$16 sm:$0x3] %vm66, %v65
    %s69 = scalar_lea.vmem [#allocation0], 384
    %70 = vst.msk [vmem:[%s69] ss:$16 sm:$0xc] %vm66, %v65
    %s71 = scalar_lea.vmem [#allocation0], 384
    %72 = vst.msk [vmem:[%s71] ss:$16 sm:$0x30] %vm66, %v65
    %s73 = scalar_lea.vmem [#allocation0], 384
    %74 = vst.msk [vmem:[%s73] ss:$16 sm:$0xc0] %vm66, %v65
    %s75 = scalar_lea.vmem %s0, 56
    %v76 = vld [vmem:[%s75] sm:$0xff]
    %vm77 = vcmask 130048
    %s78 = scalar_lea.vmem [#allocation0], 392
    %79 = vst.msk [vmem:[%s78] ss:$16 sm:$0x3] %vm77, %v76
    %s80 = scalar_lea.vmem [#allocation0], 392
    %81 = vst.msk [vmem:[%s80] ss:$16 sm:$0xc] %vm77, %v76
    %s82 = scalar_lea.vmem [#allocation0], 392
    %83 = vst.msk [vmem:[%s82] ss:$16 sm:$0x30] %vm77, %v76
    %s84 = scalar_lea.vmem [#allocation0], 392
    %85 = vst.msk [vmem:[%s84] ss:$16 sm:$0xc0] %vm77, %v76
    %v86 = vld.sshfl [vmem:[%s0] sm:$0xff pattern:$0xb3a29180]
    %87 = vrot.lane.b32.xlu0 %v86, 112
    %v88 = vpop.permute.xlu0 %87
    %vm89 = vcmask 130048
    %s90 = scalar_lea.vmem [#allocation0], 1
    %91 = vst.msk [vmem:[%s90] ss:$8 sm:$0xf] %vm89, %v88
    %s92 = scalar_lea.vmem [#allocation0], 1
    %93 = vst.msk [vmem:[%s92] ss:$8 sm:$0xf0] %vm89, %v88
    %s94 = scalar_lea.vmem %s0, 4
    %v95 = vld.sshfl [vmem:[%s94] sm:$0xff pattern:$0xb3a29180]
    %96 = vrot.lane.b32.xlu0 %v95, 112
    %v97 = vpop.permute.xlu0 %96
    %vm98 = vcmask 130048
    %s99 = scalar_lea.vmem [#allocation0], 65
    %100 = vst.msk [vmem:[%s99] ss:$8 sm:$0xf] %vm98, %v97
    %s101 = scalar_lea.vmem [#allocation0], 65
    %102 = vst.msk [vmem:[%s101] ss:$8 sm:$0xf0] %vm98, %v97
    %s103 = scalar_lea.vmem %s0, 16
    %v104 = vld.sshfl [vmem:[%s103] sm:$0xff pattern:$0xb3a29180]
    %105 = vrot.lane.b32.xlu0 %v104, 112
    %v106 = vpop.permute.xlu0 %105
    %vm107 = vcmask 130048
    %s108 = scalar_lea.vmem [#allocation0], 129
    %109 = vst.msk [vmem:[%s108] ss:$8 sm:$0xf] %vm107, %v106
    %s110 = scalar_lea.vmem [#allocation0], 129
    %111 = vst.msk [vmem:[%s110] ss:$8 sm:$0xf0] %vm107, %v106
    %s112 = scalar_lea.vmem %s0, 20
    %v113 = vld.sshfl [vmem:[%s112] sm:$0xff pattern:$0xb3a29180]
    %114 = vrot.lane.b32.xlu0 %v113, 112
    %v115 = vpop.permute.xlu0 %114
    %vm116 = vcmask 130048
    %s117 = scalar_lea.vmem [#allocation0], 193
    %118 = vst.msk [vmem:[%s117] ss:$8 sm:$0xf] %vm116, %v115
    %s119 = scalar_lea.vmem [#allocation0], 193
    %120 = vst.msk [vmem:[%s119] ss:$8 sm:$0xf0] %vm116, %v115
    %s121 = scalar_lea.vmem %s0, 32
    %v122 = vld.sshfl [vmem:[%s121] sm:$0xff pattern:$0xb3a29180]
    %123 = vrot.lane.b32.xlu0 %v122, 112
    %v124 = vpop.permute.xlu0 %123
    %vm125 = vcmask 130048
    %s126 = scalar_lea.vmem [#allocation0], 257
    %127 = vst.msk [vmem:[%s126] ss:$8 sm:$0xf] %vm125, %v124
    %s128 = scalar_lea.vmem [#allocation0], 257
    %129 = vst.msk [vmem:[%s128] ss:$8 sm:$0xf0] %vm125, %v124
    %s130 = scalar_lea.vmem %s0, 36
    %v131 = vld.sshfl [vmem:[%s130] sm:$0xff pattern:$0xb3a29180]
    %132 = vrot.lane.b32.xlu0 %v131, 112
    %v133 = vpop.permute.xlu0 %132
    %vm134 = vcmask 130048
    %s135 = scalar_lea.vmem [#allocation0], 321
    %136 = vst.msk [vmem:[%s135] ss:$8 sm:$0xf] %vm134, %v133
    %s137 = scalar_lea.vmem [#allocation0], 321
    %138 = vst.msk [vmem:[%s137] ss:$8 sm:$0xf0] %vm134, %v133
    %s139 = scalar_lea.vmem %s0, 48
    %v140 = vld.sshfl [vmem:[%s139] sm:$0xff pattern:$0xb3a29180]
    %141 = vrot.lane.b32.xlu0 %v140, 112
    %v142 = vpop.permute.xlu0 %141
    %vm143 = vcmask 130048
    %s144 = scalar_lea.vmem [#allocation0], 385
    %145 = vst.msk [vmem:[%s144] ss:$8 sm:$0xf] %vm143, %v142
    %s146 = scalar_lea.vmem [#allocation0], 385
    %147 = vst.msk [vmem:[%s146] ss:$8 sm:$0xf0] %vm143, %v142
    %s148 = scalar_lea.vmem %s0, 52
    %v149 = vld.sshfl [vmem:[%s148] sm:$0xff pattern:$0xb3a29180]
    %150 = vrot.lane.b32.xlu0 %v149, 112
    %v151 = vpop.permute.xlu0 %150
    %vm152 = vcmask 130048
    %s153 = scalar_lea.vmem [#allocation0], 449
    %154 = vst.msk [vmem:[%s153] ss:$8 sm:$0xf] %vm152, %v151
    %s155 = scalar_lea.vmem [#allocation0], 449
    %156 = vst.msk [vmem:[%s155] ss:$8 sm:$0xf0] %vm152, %v151
    %v157 = vld.sshfl [vmem:[%s0] sm:$0xff pattern:$0xb3a29180]
    %158 = vrot.lane.b32.xlu0 %v157, 96
    %v159 = vpop.permute.xlu0 %158
    %vm160 = vcmask 130048
    %s161 = scalar_lea.vmem [#allocation0], 2
    %162 = vst.msk [vmem:[%s161] ss:$8 sm:$0xf] %vm160, %v159
    %s163 = scalar_lea.vmem [#allocation0], 2
    %164 = vst.msk [vmem:[%s163] ss:$8 sm:$0xf0] %vm160, %v159
    %s165 = scalar_lea.vmem %s0, 4
    %v166 = vld.sshfl [vmem:[%s165] sm:$0xff pattern:$0xb3a29180]
    %167 = vrot.lane.b32.xlu0 %v166, 96
    %v168 = vpop.permute.xlu0 %167
    %vm169 = vcmask 130048
    %s170 = scalar_lea.vmem [#allocation0], 66
    %171 = vst.msk [vmem:[%s170] ss:$8 sm:$0xf] %vm169, %v168
    %s172 = scalar_lea.vmem [#allocation0], 66
    %173 = vst.msk [vmem:[%s172] ss:$8 sm:$0xf0] %vm169, %v168
    %s174 = scalar_lea.vmem %s0, 16
    %v175 = vld.sshfl [vmem:[%s174] sm:$0xff pattern:$0xb3a29180]
    %176 = vrot.lane.b32.xlu0 %v175, 96
    %v177 = vpop.permute.xlu0 %176
    %vm178 = vcmask 130048
    %s179 = scalar_lea.vmem [#allocation0], 130
    %180 = vst.msk [vmem:[%s179] ss:$8 sm:$0xf] %vm178, %v177
    %s181 = scalar_lea.vmem [#allocation0], 130
    %182 = vst.msk [vmem:[%s181] ss:$8 sm:$0xf0] %vm178, %v177
    %s183 = scalar_lea.vmem %s0, 20
    %v184 = vld.sshfl [vmem:[%s183] sm:$0xff pattern:$0xb3a29180]
    %185 = vrot.lane.b32.xlu0 %v184, 96
    %v186 = vpop.permute.xlu0 %185
    %vm187 = vcmask 130048
    %s188 = scalar_lea.vmem [#allocation0], 194
    %189 = vst.msk [vmem:[%s188] ss:$8 sm:$0xf] %vm187, %v186
    %s190 = scalar_lea.vmem [#allocation0], 194
    %191 = vst.msk [vmem:[%s190] ss:$8 sm:$0xf0] %vm187, %v186
    %s192 = scalar_lea.vmem %s0, 32
    %v193 = vld.sshfl [vmem:[%s192] sm:$0xff pattern:$0xb3a29180]
    %194 = vrot.lane.b32.xlu0 %v193, 96
    %v195 = vpop.permute.xlu0 %194
    %vm196 = vcmask 130048
    %s197 = scalar_lea.vmem [#allocation0], 258
    %198 = vst.msk [vmem:[%s197] ss:$8 sm:$0xf] %vm196, %v195
    %s199 = scalar_lea.vmem [#allocation0], 258
    %200 = vst.msk [vmem:[%s199] ss:$8 sm:$0xf0] %vm196, %v195
    %s201 = scalar_lea.vmem %s0, 36
    %v202 = vld.sshfl [vmem:[%s201] sm:$0xff pattern:$0xb3a29180]
    %203 = vrot.lane.b32.xlu0 %v202, 96
    %v204 = vpop.permute.xlu0 %203
    %vm205 = vcmask 130048
    %s206 = scalar_lea.vmem [#allocation0], 322
    %207 = vst.msk [vmem:[%s206] ss:$8 sm:$0xf] %vm205, %v204
    %s208 = scalar_lea.vmem [#allocation0], 322
    %209 = vst.msk [vmem:[%s208] ss:$8 sm:$0xf0] %vm205, %v204
    %s210 = scalar_lea.vmem %s0, 48
    %v211 = vld.sshfl [vmem:[%s210] sm:$0xff pattern:$0xb3a29180]
    %212 = vrot.lane.b32.xlu0 %v211, 96
    %v213 = vpop.permute.xlu0 %212
    %vm214 = vcmask 130048
    %s215 = scalar_lea.vmem [#allocation0], 386
    %216 = vst.msk [vmem:[%s215] ss:$8 sm:$0xf] %vm214, %v213
    %s217 = scalar_lea.vmem [#allocation0], 386
    %218 = vst.msk [vmem:[%s217] ss:$8 sm:$0xf0] %vm214, %v213
    %s219 = scalar_lea.vmem %s0, 52
    %v220 = vld.sshfl [vmem:[%s219] sm:$0xff pattern:$0xb3a29180]
    %221 = vrot.lane.b32.xlu0 %v220, 96
    %v222 = vpop.permute.xlu0 %221
    %vm223 = vcmask 130048
    %s224 = scalar_lea.vmem [#allocation0], 450
    %225 = vst.msk [vmem:[%s224] ss:$8 sm:$0xf] %vm223, %v222
    %s226 = scalar_lea.vmem [#allocation0], 450
    %227 = vst.msk [vmem:[%s226] ss:$8 sm:$0xf0] %vm223, %v222
    %v228 = vld.sshfl [vmem:[%s0] sm:$0xff pattern:$0xb3a29180]
    %229 = vrot.lane.b32.xlu0 %v228, 80
    %v230 = vpop.permute.xlu0 %229
    %vm231 = vcmask 130048
    %s232 = scalar_lea.vmem [#allocation0], 3
    %233 = vst.msk [vmem:[%s232] ss:$8 sm:$0xf] %vm231, %v230
    %s234 = scalar_lea.vmem [#allocation0], 3
    %235 = vst.msk [vmem:[%s234] ss:$8 sm:$0xf0] %vm231, %v230
    %s236 = scalar_lea.vmem %s0, 4
    %v237 = vld.sshfl [vmem:[%s236] sm:$0xff pattern:$0xb3a29180]
    %238 = vrot.lane.b32.xlu0 %v237, 80
    %v239 = vpop.permute.xlu0 %238
    %vm240 = vcmask 130048
    %s241 = scalar_lea.vmem [#allocation0], 67
    %242 = vst.msk [vmem:[%s241] ss:$8 sm:$0xf] %vm240, %v239
    %s243 = scalar_lea.vmem [#allocation0], 67
    %244 = vst.msk [vmem:[%s243] ss:$8 sm:$0xf0] %vm240, %v239
    %s245 = scalar_lea.vmem %s0, 16
    %v246 = vld.sshfl [vmem:[%s245] sm:$0xff pattern:$0xb3a29180]
    %247 = vrot.lane.b32.xlu0 %v246, 80
    %v248 = vpop.permute.xlu0 %247
    %vm249 = vcmask 130048
    %s250 = scalar_lea.vmem [#allocation0], 131
    %251 = vst.msk [vmem:[%s250] ss:$8 sm:$0xf] %vm249, %v248
    %s252 = scalar_lea.vmem [#allocation0], 131
    %253 = vst.msk [vmem:[%s252] ss:$8 sm:$0xf0] %vm249, %v248
    %s254 = scalar_lea.vmem %s0, 20
    %v255 = vld.sshfl [vmem:[%s254] sm:$0xff pattern:$0xb3a29180]
    %256 = vrot.lane.b32.xlu0 %v255, 80
    %v257 = vpop.permute.xlu0 %256
    %vm258 = vcmask 130048
    %s259 = scalar_lea.vmem [#allocation0], 195
    %260 = vst.msk [vmem:[%s259] ss:$8 sm:$0xf] %vm258, %v257
    %s261 = scalar_lea.vmem [#allocation0], 195
    %262 = vst.msk [vmem:[%s261] ss:$8 sm:$0xf0] %vm258, %v257
    %s263 = scalar_lea.vmem %s0, 32
    %v264 = vld.sshfl [vmem:[%s263] sm:$0xff pattern:$0xb3a29180]
    %265 = vrot.lane.b32.xlu0 %v264, 80
    %v266 = vpop.permute.xlu0 %265
    %vm267 = vcmask 130048
    %s268 = scalar_lea.vmem [#allocation0], 259
    %269 = vst.msk [vmem:[%s268] ss:$8 sm:$0xf] %vm267, %v266
    %s270 = scalar_lea.vmem [#allocation0], 259
    %271 = vst.msk [vmem:[%s270] ss:$8 sm:$0xf0] %vm267, %v266
    %s272 = scalar_lea.vmem %s0, 36
    %v273 = vld.sshfl [vmem:[%s272] sm:$0xff pattern:$0xb3a29180]
    %274 = vrot.lane.b32.xlu0 %v273, 80
    %v275 = vpop.permute.xlu0 %274
    %vm276 = vcmask 130048
    %s277 = scalar_lea.vmem [#allocation0], 323
    %278 = vst.msk [vmem:[%s277] ss:$8 sm:$0xf] %vm276, %v275
    %s279 = scalar_lea.vmem [#allocation0], 323
    %280 = vst.msk [vmem:[%s279] ss:$8 sm:$0xf0] %vm276, %v275
    %s281 = scalar_lea.vmem %s0, 48
    %v282 = vld.sshfl [vmem:[%s281] sm:$0xff pattern:$0xb3a29180]
    %283 = vrot.lane.b32.xlu0 %v282, 80
    %v284 = vpop.permute.xlu0 %283
    %vm285 = vcmask 130048
    %s286 = scalar_lea.vmem [#allocation0], 387
    %287 = vst.msk [vmem:[%s286] ss:$8 sm:$0xf] %vm285, %v284
    %s288 = scalar_lea.vmem [#allocation0], 387
    %289 = vst.msk [vmem:[%s288] ss:$8 sm:$0xf0] %vm285, %v284
    %s290 = scalar_lea.vmem %s0, 52
    %v291 = vld.sshfl [vmem:[%s290] sm:$0xff pattern:$0xb3a29180]
    %292 = vrot.lane.b32.xlu0 %v291, 80
    %v293 = vpop.permute.xlu0 %292
    %vm294 = vcmask 130048
    %s295 = scalar_lea.vmem [#allocation0], 451
    %296 = vst.msk [vmem:[%s295] ss:$8 sm:$0xf] %vm294, %v293
    %s297 = scalar_lea.vmem [#allocation0], 451
    %298 = vst.msk [vmem:[%s297] ss:$8 sm:$0xf0] %vm294, %v293
    %v299 = vld.sshfl [vmem:[%s0] sm:$0xff pattern:$0xb3a29180]
    %300 = vrot.lane.b32.xlu0 %v299, 64
    %v301 = vpop.permute.xlu0 %300
    %vm302 = vcmask 130048
    %s303 = scalar_lea.vmem [#allocation0], 4
    %304 = vst.msk [vmem:[%s303] ss:$8 sm:$0xf] %vm302, %v301
    %s305 = scalar_lea.vmem [#allocation0], 4
    %306 = vst.msk [vmem:[%s305] ss:$8 sm:$0xf0] %vm302, %v301
    %s307 = scalar_lea.vmem %s0, 4
    %v308 = vld.sshfl [vmem:[%s307] sm:$0xff pattern:$0xb3a29180]
    %309 = vrot.lane.b32.xlu0 %v308, 64
    %v310 = vpop.permute.xlu0 %309
    %vm311 = vcmask 130048
    %s312 = scalar_lea.vmem [#allocation0], 68
    %313 = vst.msk [vmem:[%s312] ss:$8 sm:$0xf] %vm311, %v310
    %s314 = scalar_lea.vmem [#allocation0], 68
    %315 = vst.msk [vmem:[%s314] ss:$8 sm:$0xf0] %vm311, %v310
    %s316 = scalar_lea.vmem %s0, 16
    %v317 = vld.sshfl [vmem:[%s316] sm:$0xff pattern:$0xb3a29180]
    %318 = vrot.lane.b32.xlu0 %v317, 64
    %v319 = vpop.permute.xlu0 %318
    %vm320 = vcmask 130048
    %s321 = scalar_lea.vmem [#allocation0], 132
    %322 = vst.msk [vmem:[%s321] ss:$8 sm:$0xf] %vm320, %v319
    %s323 = scalar_lea.vmem [#allocation0], 132
    %324 = vst.msk [vmem:[%s323] ss:$8 sm:$0xf0] %vm320, %v319
    %s325 = scalar_lea.vmem %s0, 20
    %v326 = vld.sshfl [vmem:[%s325] sm:$0xff pattern:$0xb3a29180]
    %327 = vrot.lane.b32.xlu0 %v326, 64
    %v328 = vpop.permute.xlu0 %327
    %vm329 = vcmask 130048
    %s330 = scalar_lea.vmem [#allocation0], 196
    %331 = vst.msk [vmem:[%s330] ss:$8 sm:$0xf] %vm329, %v328
    %s332 = scalar_lea.vmem [#allocation0], 196
    %333 = vst.msk [vmem:[%s332] ss:$8 sm:$0xf0] %vm329, %v328
    %s334 = scalar_lea.vmem %s0, 32
    %v335 = vld.sshfl [vmem:[%s334] sm:$0xff pattern:$0xb3a29180]
    %336 = vrot.lane.b32.xlu0 %v335, 64
    %v337 = vpop.permute.xlu0 %336
    %vm338 = vcmask 130048
    %s339 = scalar_lea.vmem [#allocation0], 260
    %340 = vst.msk [vmem:[%s339] ss:$8 sm:$0xf] %vm338, %v337
    %s341 = scalar_lea.vmem [#allocation0], 260
    %342 = vst.msk [vmem:[%s341] ss:$8 sm:$0xf0] %vm338, %v337
    %s343 = scalar_lea.vmem %s0, 36
    %v344 = vld.sshfl [vmem:[%s343] sm:$0xff pattern:$0xb3a29180]
    %345 = vrot.lane.b32.xlu0 %v344, 64
    %v346 = vpop.permute.xlu0 %345
    %vm347 = vcmask 130048
    %s348 = scalar_lea.vmem [#allocation0], 324
    %349 = vst.msk [vmem:[%s348] ss:$8 sm:$0xf] %vm347, %v346
    %s350 = scalar_lea.vmem [#allocation0], 324
    %351 = vst.msk [vmem:[%s350] ss:$8 sm:$0xf0] %vm347, %v346
    %s352 = scalar_lea.vmem %s0, 48
    %v353 = vld.sshfl [vmem:[%s352] sm:$0xff pattern:$0xb3a29180]
    %354 = vrot.lane.b32.xlu0 %v353, 64
    %v355 = vpop.permute.xlu0 %354
    %vm356 = vcmask 130048
    %s357 = scalar_lea.vmem [#allocation0], 388
    %358 = vst.msk [vmem:[%s357] ss:$8 sm:$0xf] %vm356, %v355
    %s359 = scalar_lea.vmem [#allocation0], 388
    %360 = vst.msk [vmem:[%s359] ss:$8 sm:$0xf0] %vm356, %v355
    %s361 = scalar_lea.vmem %s0, 52
    %v362 = vld.sshfl [vmem:[%s361] sm:$0xff pattern:$0xb3a29180]
    %363 = vrot.lane.b32.xlu0 %v362, 64
    %v364 = vpop.permute.xlu0 %363
    %vm365 = vcmask 130048
    %s366 = scalar_lea.vmem [#allocation0], 452
    %367 = vst.msk [vmem:[%s366] ss:$8 sm:$0xf] %vm365, %v364
    %s368 = scalar_lea.vmem [#allocation0], 452
    %369 = vst.msk [vmem:[%s368] ss:$8 sm:$0xf0] %vm365, %v364
    %v370 = vld.sshfl [vmem:[%s0] sm:$0xff pattern:$0xb3a29180]
    %371 = vrot.lane.b32.xlu0 %v370, 48
    %v372 = vpop.permute.xlu0 %371
    %vm373 = vcmask 130048
    %s374 = scalar_lea.vmem [#allocation0], 5
    %375 = vst.msk [vmem:[%s374] ss:$8 sm:$0xf] %vm373, %v372
    %s376 = scalar_lea.vmem [#allocation0], 5
    %377 = vst.msk [vmem:[%s376] ss:$8 sm:$0xf0] %vm373, %v372
    %s378 = scalar_lea.vmem %s0, 4
    %v379 = vld.sshfl [vmem:[%s378] sm:$0xff pattern:$0xb3a29180]
    %380 = vrot.lane.b32.xlu0 %v379, 48
    %v381 = vpop.permute.xlu0 %380
    %vm382 = vcmask 130048
    %s383 = scalar_lea.vmem [#allocation0], 69
    %384 = vst.msk [vmem:[%s383] ss:$8 sm:$0xf] %vm382, %v381
    %s385 = scalar_lea.vmem [#allocation0], 69
    %386 = vst.msk [vmem:[%s385] ss:$8 sm:$0xf0] %vm382, %v381
    %s387 = scalar_lea.vmem %s0, 16
    %v388 = vld.sshfl [vmem:[%s387] sm:$0xff pattern:$0xb3a29180]
    %389 = vrot.lane.b32.xlu0 %v388, 48
    %v390 = vpop.permute.xlu0 %389
    %vm391 = vcmask 130048
    %s392 = scalar_lea.vmem [#allocation0], 133
    %393 = vst.msk [vmem:[%s392] ss:$8 sm:$0xf] %vm391, %v390
    %s394 = scalar_lea.vmem [#allocation0], 133
    %395 = vst.msk [vmem:[%s394] ss:$8 sm:$0xf0] %vm391, %v390
    %s396 = scalar_lea.vmem %s0, 20
    %v397 = vld.sshfl [vmem:[%s396] sm:$0xff pattern:$0xb3a29180]
    %398 = vrot.lane.b32.xlu0 %v397, 48
    %v399 = vpop.permute.xlu0 %398
    %vm400 = vcmask 130048
    %s401 = scalar_lea.vmem [#allocation0], 197
    %402 = vst.msk [vmem:[%s401] ss:$8 sm:$0xf] %vm400, %v399
    %s403 = scalar_lea.vmem [#allocation0], 197
    %404 = vst.msk [vmem:[%s403] ss:$8 sm:$0xf0] %vm400, %v399
    %s405 = scalar_lea.vmem %s0, 32
    %v406 = vld.sshfl [vmem:[%s405] sm:$0xff pattern:$0xb3a29180]
    %407 = vrot.lane.b32.xlu0 %v406, 48
    %v408 = vpop.permute.xlu0 %407
    %vm409 = vcmask 130048
    %s410 = scalar_lea.vmem [#allocation0], 261
    %411 = vst.msk [vmem:[%s410] ss:$8 sm:$0xf] %vm409, %v408
    %s412 = scalar_lea.vmem [#allocation0], 261
    %413 = vst.msk [vmem:[%s412] ss:$8 sm:$0xf0] %vm409, %v408
    %s414 = scalar_lea.vmem %s0, 36
    %v415 = vld.sshfl [vmem:[%s414] sm:$0xff pattern:$0xb3a29180]
    %416 = vrot.lane.b32.xlu0 %v415, 48
    %v417 = vpop.permute.xlu0 %416
    %vm418 = vcmask 130048
    %s419 = scalar_lea.vmem [#allocation0], 325
    %420 = vst.msk [vmem:[%s419] ss:$8 sm:$0xf] %vm418, %v417
    %s421 = scalar_lea.vmem [#allocation0], 325
    %422 = vst.msk [vmem:[%s421] ss:$8 sm:$0xf0] %vm418, %v417
    %s423 = scalar_lea.vmem %s0, 48
    %v424 = vld.sshfl [vmem:[%s423] sm:$0xff pattern:$0xb3a29180]
    %425 = vrot.lane.b32.xlu0 %v424, 48
    %v426 = vpop.permute.xlu0 %425
    %vm427 = vcmask 130048
    %s428 = scalar_lea.vmem [#allocation0], 389
    %429 = vst.msk [vmem:[%s428] ss:$8 sm:$0xf] %vm427, %v426
    %s430 = scalar_lea.vmem [#allocation0], 389
    %431 = vst.msk [vmem:[%s430] ss:$8 sm:$0xf0] %vm427, %v426
    %s432 = scalar_lea.vmem %s0, 52
    %v433 = vld.sshfl [vmem:[%s432] sm:$0xff pattern:$0xb3a29180]
    %434 = vrot.lane.b32.xlu0 %v433, 48
    %v435 = vpop.permute.xlu0 %434
    %vm436 = vcmask 130048
    %s437 = scalar_lea.vmem [#allocation0], 453
    %438 = vst.msk [vmem:[%s437] ss:$8 sm:$0xf] %vm436, %v435
    %s439 = scalar_lea.vmem [#allocation0], 453
    %440 = vst.msk [vmem:[%s439] ss:$8 sm:$0xf0] %vm436, %v435
    %v441 = vld.sshfl [vmem:[%s0] sm:$0xff pattern:$0xb3a29180]
    %442 = vrot.lane.b32.xlu0 %v441, 32
    %v443 = vpop.permute.xlu0 %442
    %vm444 = vcmask 130048
    %s445 = scalar_lea.vmem [#allocation0], 6
    %446 = vst.msk [vmem:[%s445] ss:$8 sm:$0xf] %vm444, %v443
    %s447 = scalar_lea.vmem [#allocation0], 6
    %448 = vst.msk [vmem:[%s447] ss:$8 sm:$0xf0] %vm444, %v443
    %s449 = scalar_lea.vmem %s0, 4
    %v450 = vld.sshfl [vmem:[%s449] sm:$0xff pattern:$0xb3a29180]
    %451 = vrot.lane.b32.xlu0 %v450, 32
    %v452 = vpop.permute.xlu0 %451
    %vm453 = vcmask 130048
    %s454 = scalar_lea.vmem [#allocation0], 70
    %455 = vst.msk [vmem:[%s454] ss:$8 sm:$0xf] %vm453, %v452
    %s456 = scalar_lea.vmem [#allocation0], 70
    %457 = vst.msk [vmem:[%s456] ss:$8 sm:$0xf0] %vm453, %v452
    %s458 = scalar_lea.vmem %s0, 16
    %v459 = vld.sshfl [vmem:[%s458] sm:$0xff pattern:$0xb3a29180]
    %460 = vrot.lane.b32.xlu0 %v459, 32
    %v461 = vpop.permute.xlu0 %460
    %vm462 = vcmask 130048
    %s463 = scalar_lea.vmem [#allocation0], 134
    %464 = vst.msk [vmem:[%s463] ss:$8 sm:$0xf] %vm462, %v461
    %s465 = scalar_lea.vmem [#allocation0], 134
    %466 = vst.msk [vmem:[%s465] ss:$8 sm:$0xf0] %vm462, %v461
    %s467 = scalar_lea.vmem %s0, 20
    %v468 = vld.sshfl [vmem:[%s467] sm:$0xff pattern:$0xb3a29180]
    %469 = vrot.lane.b32.xlu0 %v468, 32
    %v470 = vpop.permute.xlu0 %469
    %vm471 = vcmask 130048
    %s472 = scalar_lea.vmem [#allocation0], 198
    %473 = vst.msk [vmem:[%s472] ss:$8 sm:$0xf] %vm471, %v470
    %s474 = scalar_lea.vmem [#allocation0], 198
    %475 = vst.msk [vmem:[%s474] ss:$8 sm:$0xf0] %vm471, %v470
    %s476 = scalar_lea.vmem %s0, 32
    %v477 = vld.sshfl [vmem:[%s476] sm:$0xff pattern:$0xb3a29180]
    %478 = vrot.lane.b32.xlu0 %v477, 32
    %v479 = vpop.permute.xlu0 %478
    %vm480 = vcmask 130048
    %s481 = scalar_lea.vmem [#allocation0], 262
    %482 = vst.msk [vmem:[%s481] ss:$8 sm:$0xf] %vm480, %v479
    %s483 = scalar_lea.vmem [#allocation0], 262
    %484 = vst.msk [vmem:[%s483] ss:$8 sm:$0xf0] %vm480, %v479
    %s485 = scalar_lea.vmem %s0, 36
    %v486 = vld.sshfl [vmem:[%s485] sm:$0xff pattern:$0xb3a29180]
    %487 = vrot.lane.b32.xlu0 %v486, 32
    %v488 = vpop.permute.xlu0 %487
    %vm489 = vcmask 130048
    %s490 = scalar_lea.vmem [#allocation0], 326
    %491 = vst.msk [vmem:[%s490] ss:$8 sm:$0xf] %vm489, %v488
    %s492 = scalar_lea.vmem [#allocation0], 326
    %493 = vst.msk [vmem:[%s492] ss:$8 sm:$0xf0] %vm489, %v488
    %s494 = scalar_lea.vmem %s0, 48
    %v495 = vld.sshfl [vmem:[%s494] sm:$0xff pattern:$0xb3a29180]
    %496 = vrot.lane.b32.xlu0 %v495, 32
    %v497 = vpop.permute.xlu0 %496
    %vm498 = vcmask 130048
    %s499 = scalar_lea.vmem [#allocation0], 390
    %500 = vst.msk [vmem:[%s499] ss:$8 sm:$0xf] %vm498, %v497
    %s501 = scalar_lea.vmem [#allocation0], 390
    %502 = vst.msk [vmem:[%s501] ss:$8 sm:$0xf0] %vm498, %v497
    %s503 = scalar_lea.vmem %s0, 52
    %v504 = vld.sshfl [vmem:[%s503] sm:$0xff pattern:$0xb3a29180]
    %505 = vrot.lane.b32.xlu0 %v504, 32
    %v506 = vpop.permute.xlu0 %505
    %vm507 = vcmask 130048
    %s508 = scalar_lea.vmem [#allocation0], 454
    %509 = vst.msk [vmem:[%s508] ss:$8 sm:$0xf] %vm507, %v506
    %s510 = scalar_lea.vmem [#allocation0], 454
    %511 = vst.msk [vmem:[%s510] ss:$8 sm:$0xf0] %vm507, %v506
    %v512 = vld.sshfl [vmem:[%s0] sm:$0xff pattern:$0xb3a29180]
    %513 = vrot.lane.b32.xlu0 %v512, 16
    %v514 = vpop.permute.xlu0 %513
    %vm515 = vcmask 130048
    %s516 = scalar_lea.vmem [#allocation0], 7
    %517 = vst.msk [vmem:[%s516] ss:$8 sm:$0xf] %vm515, %v514
    %s518 = scalar_lea.vmem [#allocation0], 7
    %519 = vst.msk [vmem:[%s518] ss:$8 sm:$0xf0] %vm515, %v514
    %s520 = scalar_lea.vmem %s0, 4
    %v521 = vld.sshfl [vmem:[%s520] sm:$0xff pattern:$0xb3a29180]
    %522 = vrot.lane.b32.xlu0 %v521, 16
    %v523 = vpop.permute.xlu0 %522
    %vm524 = vcmask 130048
    %s525 = scalar_lea.vmem [#allocation0], 71
    %526 = vst.msk [vmem:[%s525] ss:$8 sm:$0xf] %vm524, %v523
    %s527 = scalar_lea.vmem [#allocation0], 71
    %528 = vst.msk [vmem:[%s527] ss:$8 sm:$0xf0] %vm524, %v523
    %s529 = scalar_lea.vmem %s0, 16
    %v530 = vld.sshfl [vmem:[%s529] sm:$0xff pattern:$0xb3a29180]
    %531 = vrot.lane.b32.xlu0 %v530, 16
    %v532 = vpop.permute.xlu0 %531
    %vm533 = vcmask 130048
    %s534 = scalar_lea.vmem [#allocation0], 135
    %535 = vst.msk [vmem:[%s534] ss:$8 sm:$0xf] %vm533, %v532
    %s536 = scalar_lea.vmem [#allocation0], 135
    %537 = vst.msk [vmem:[%s536] ss:$8 sm:$0xf0] %vm533, %v532
    %s538 = scalar_lea.vmem %s0, 20
    %v539 = vld.sshfl [vmem:[%s538] sm:$0xff pattern:$0xb3a29180]
    %540 = vrot.lane.b32.xlu0 %v539, 16
    %v541 = vpop.permute.xlu0 %540
    %vm542 = vcmask 130048
    %s543 = scalar_lea.vmem [#allocation0], 199
    %544 = vst.msk [vmem:[%s543] ss:$8 sm:$0xf] %vm542, %v541
    %s545 = scalar_lea.vmem [#allocation0], 199
    %546 = vst.msk [vmem:[%s545] ss:$8 sm:$0xf0] %vm542, %v541
    %s547 = scalar_lea.vmem %s0, 32
    %v548 = vld.sshfl [vmem:[%s547] sm:$0xff pattern:$0xb3a29180]
    %549 = vrot.lane.b32.xlu0 %v548, 16
    %v550 = vpop.permute.xlu0 %549
    %vm551 = vcmask 130048
    %s552 = scalar_lea.vmem [#allocation0], 263
    %553 = vst.msk [vmem:[%s552] ss:$8 sm:$0xf] %vm551, %v550
    %s554 = scalar_lea.vmem [#allocation0], 263
    %555 = vst.msk [vmem:[%s554] ss:$8 sm:$0xf0] %vm551, %v550
    %s556 = scalar_lea.vmem %s0, 36
    %v557 = vld.sshfl [vmem:[%s556] sm:$0xff pattern:$0xb3a29180]
    %558 = vrot.lane.b32.xlu0 %v557, 16
    %v559 = vpop.permute.xlu0 %558
    %vm560 = vcmask 130048
    %s561 = scalar_lea.vmem [#allocation0], 327
    %562 = vst.msk [vmem:[%s561] ss:$8 sm:$0xf] %vm560, %v559
    %s563 = scalar_lea.vmem [#allocation0], 327
    %564 = vst.msk [vmem:[%s563] ss:$8 sm:$0xf0] %vm560, %v559
    %s565 = scalar_lea.vmem %s0, 48
    %v566 = vld.sshfl [vmem:[%s565] sm:$0xff pattern:$0xb3a29180]
    %567 = vrot.lane.b32.xlu0 %v566, 16
    %v568 = vpop.permute.xlu0 %567
    %vm569 = vcmask 130048
    %s570 = scalar_lea.vmem [#allocation0], 391
    %571 = vst.msk [vmem:[%s570] ss:$8 sm:$0xf] %vm569, %v568
    %s572 = scalar_lea.vmem [#allocation0], 391
    %573 = vst.msk [vmem:[%s572] ss:$8 sm:$0xf0] %vm569, %v568
    %s574 = scalar_lea.vmem %s0, 52
    %v575 = vld.sshfl [vmem:[%s574] sm:$0xff pattern:$0xb3a29180]
    %576 = vrot.lane.b32.xlu0 %v575, 16
    %v577 = vpop.permute.xlu0 %576
    %vm578 = vcmask 130048
    %s579 = scalar_lea.vmem [#allocation0], 455
    %580 = vst.msk [vmem:[%s579] ss:$8 sm:$0xf] %vm578, %v577
    %s581 = scalar_lea.vmem [#allocation0], 455
    %582 = vst.msk [vmem:[%s581] ss:$8 sm:$0xf0] %vm578, %v577
    %s584 = ssub.s32 8192, 8192
    %585 = vsyncadd [#allocation1], %s584
    %s587 = sshll.u32 [#allocation0], 4
    %s588 = int_to_ptr.vmem [resolvable:$true] %s587
    %590 = dma.vmem_to_hbm [thread:$0]  %s588, 8192, %s1, [#allocation1]
    %591 = dma.done [#allocation1], 8192
    %592 = vsyncpa [#allocation1], 1

// kernel: coattention_module.1
$region0: #{coattention_module.1}
  #allocation0 [shape = 'u32[]', space=smem, size = 0x4, offset = 0x4, fixed_abs, tag = 'smem constant byte address 0x4 - core index']
  #allocation1 [shape = 'u32[144,128]{1,0:T(1,128)}', space=vmem, size = 0x12000, scoped, tag = 'internal scratch']
  #allocation2 [shape = 'bf16[32,256]{1,0:T(8,128)(2,1)}', space=vmem, size = 0x4000, scoped, tag = 'scratch operand']
  #allocation3 [shape = 'bf16[9,256]{1,0:T(8,128)(2,1)}', space=vmem, size = 0x2000, scoped, tag = 'scratch operand']
  %s0 = inlined_call_operand.vmem [shape: f32[2,2,9,256], index: 0, kind: input, shape index: {}, may-alias: {0,1}]
  %s1 = inlined_call_operand.vmem [shape: f32[2,2,9,256], index: 1, kind: input, shape index: {}, may-alias: {0,1}]
  %s2 = inlined_call_operand.vmem [shape: f32[9,32], index: 2, kind: input, shape index: {}]
  %s3 = inlined_call_operand.vmem [shape: f32[9,32], index: 3, kind: input, shape index: {}]
  %s4 = inlined_call_operand.vmem [shape: f32[2,2,16,256], index: 4, kind: output, shape index: {}]
  %s5 = sld [smem:[#allocation0]]
  $region53: #{coattention_module.1} parent=0
    _
  %s7 = ssub.s32 1, %s5
  %s8 = scalar_select 0, %s7, %s5
  loop: start=0, step=1, limit=6
  $region2: #{coattention_module.1} parent=0 // loop_pre_header
    _
  $region3: #{coattention_module.1} parent=0 // loop_header
    %s10 = sphi 0, %s14
    %p11 = scmp.ge.s32.totalorder %s10, 6
    %s17 = sphi 0, %s36
    %s18 = sphi 0, %s32
    %s19 = sphi 0, %s28
    %s20 = sphi 0, %s17
    %s21 = sphi 0, %s18
    %s22 = sphi 0, %s19
    %s23 = sphi 0, %s20
    %s24 = sphi 0, %s21
    %s25 = sphi 0, %s22
    %s43 = sphi 0, %s45
    %s46 = sphi 0, %s43
    %s47 = sphi 0, %s46
    %s63 = sphi 0, %s47
    %s73 = sphi 0, %s75
    %s76 = sphi 0, %s73
    %s77 = sphi 0, %s76
    %s93 = sphi 0, %s77
    %s97 = sphi 0, %s97
    %s99 = sphi 0, %s97
    %s100 = sphi 0, %s99
    %s114 = sphi 0, %s100
    %s118 = sphi 0, %s118
    %s120 = sphi 0, %s118
    %s121 = sphi 0, %s120
    %s135 = sphi 0, %s121
    %s145 = sphi 0, %s147
    %s148 = sphi 0, %s145
    %s149 = sphi 0, %s148
    %s165 = sphi 0, %s149
  $region4: #{coattention_module.1} parent=0 // loop_header_branch
    %13 = sbr.rel (%p11) target = $region8
  $region5: #{coattention_module.1} parent=0 // loop_body
    %s15 = ssub.s32 %s10, 1
    %s16 = ssub.s32 %s10, 2
    %s26 = sadd.s32 1, %s19
    %p27 = scmp.ge.s32.totalorder %s26, 1
    %s28 = scalar_select %p27, 0, %s26
    %s29 = sadd.s32 1, %s18
    %s30 = scalar_select %p27, %s29, %s18
    %p31 = scmp.ge.s32.totalorder %s30, 2
    %s32 = scalar_select %p31, 0, %s30
    %s33 = sadd.s32 1, %s17
    %s34 = scalar_select %p31, %s33, %s17
    %p35 = scmp.ge.s32.totalorder %s34, 2
    %s36 = scalar_select %p35, 0, %s34
    %s37 = ssub.s32 %s17, %s36
    %s38 = ssub.s32 %s18, %s32
    %s39 = sor.u32 %s37, %s38
    %s40 = ssub.s32 %s19, %s28
    %s41 = sor.u32 %s39, %s40
    %p42 = scmp.eq.s32.totalorder %s41, 0
    %s44 = sadd.s32 %s43, 1
    %s45 = scalar_select %p42, %s43, %s44
    %p48 = pneg %p42
    %p49 = scmp.eq.s32.totalorder %s10, 3
    %p50 = por %p48, %p49
    %p51 = scmp.ne.s32.totalorder %s43, %s46
    %p52 = scmp.eq.s32.totalorder %s10, 0
    %p53 = por %p51, %p52
    %p54 = scmp.ne.s32.totalorder %s43, %s46
    %p55 = scmp.eq.s32.totalorder %s15, 3
    %p56 = por %p54, %p55
    %p57 = scmp.ne.s32.totalorder %s46, %s47
    %p58 = scmp.eq.s32.totalorder %s15, 0
    %p59 = por %p57, %p58
    %p60 = scmp.ne.s32.totalorder %s46, %s47
    %p61 = scmp.eq.s32.totalorder %s16, 3
    %p62 = por %p60, %p61
    %p64 = scmp.ne.s32.totalorder %s47, %s63
    %p65 = scmp.eq.s32.totalorder %s16, 0
    %p66 = por %p64, %p65
    %s67 = ssub.s32 1, %s17
    %s68 = ssub.s32 1, %s36
    %s69 = ssub.s32 %s67, %s68
    %s70 = ssub.s32 %s18, %s32
    %s71 = sor.u32 %s69, %s70
    %p72 = scmp.eq.s32.totalorder %s71, 0
    %s74 = sadd.s32 %s73, 1
    %s75 = scalar_select %p72, %s73, %s74
    %p78 = pneg %p72
    %p79 = scmp.eq.s32.totalorder %s10, 3
    %p80 = por %p78, %p79
    %p81 = scmp.ne.s32.totalorder %s73, %s76
    %p82 = scmp.eq.s32.totalorder %s10, 0
    %p83 = por %p81, %p82
    %p84 = scmp.ne.s32.totalorder %s73, %s76
    %p85 = scmp.eq.s32.totalorder %s15, 3
    %p86 = por %p84, %p85
    %p87 = scmp.ne.s32.totalorder %s76, %s77
    %p88 = scmp.eq.s32.totalorder %s15, 0
    %p89 = por %p87, %p88
    %p90 = scmp.ne.s32.totalorder %s76, %s77
    %p91 = scmp.eq.s32.totalorder %s16, 3
    %p92 = por %p90, %p91
    %p94 = scmp.ne.s32.totalorder %s77, %s93
    %p95 = scmp.eq.s32.totalorder %s16, 0
    %p96 = por %p94, %p95
    %s98 = sadd.s32 %s97, 1
    %p101 = scmp.eq.s32.totalorder %s10, 3
    %p102 = scmp.ne.s32.totalorder %s97, %s99
    %p103 = scmp.eq.s32.totalorder %s10, 0
    %p104 = por %p102, %p103
    %p105 = scmp.ne.s32.totalorder %s97, %s99
    %p106 = scmp.eq.s32.totalorder %s15, 3
    %p107 = por %p105, %p106
    %p108 = scmp.ne.s32.totalorder %s99, %s100
    %p109 = scmp.eq.s32.totalorder %s15, 0
    %p110 = por %p108, %p109
    %p111 = scmp.ne.s32.totalorder %s99, %s100
    %p112 = scmp.eq.s32.totalorder %s16, 3
    %p113 = por %p111, %p112
    %p115 = scmp.ne.s32.totalorder %s100, %s114
    %p116 = scmp.eq.s32.totalorder %s16, 0
    %p117 = por %p115, %p116
    %s119 = sadd.s32 %s118, 1
    %p122 = scmp.eq.s32.totalorder %s10, 3
    %p123 = scmp.ne.s32.totalorder %s118, %s120
    %p124 = scmp.eq.s32.totalorder %s10, 0
    %p125 = por %p123, %p124
    %p126 = scmp.ne.s32.totalorder %s118, %s120
    %p127 = scmp.eq.s32.totalorder %s15, 3
    %p128 = por %p126, %p127
    %p129 = scmp.ne.s32.totalorder %s120, %s121
    %p130 = scmp.eq.s32.totalorder %s15, 0
    %p131 = por %p129, %p130
    %p132 = scmp.ne.s32.totalorder %s120, %s121
    %p133 = scmp.eq.s32.totalorder %s16, 3
    %p134 = por %p132, %p133
    %p136 = scmp.ne.s32.totalorder %s121, %s135
    %p137 = scmp.eq.s32.totalorder %s16, 0
    %p138 = por %p136, %p137
    %s139 = ssub.s32 %s17, %s36
    %s140 = ssub.s32 %s18, %s32
    %s141 = sor.u32 %s139, %s140
    %s142 = ssub.s32 %s19, %s28
    %s143 = sor.u32 %s141, %s142
    %p144 = scmp.eq.s32.totalorder %s143, 0
    %s146 = sadd.s32 %s145, 1
    %s147 = scalar_select %p144, %s145, %s146
    %p150 = pneg %p144
    %p151 = scmp.eq.s32.totalorder %s10, 3
    %p152 = por %p150, %p151
    %p153 = scmp.ne.s32.totalorder %s145, %s148
    %p154 = scmp.eq.s32.totalorder %s10, 0
    %p155 = por %p153, %p154
    %p156 = scmp.ne.s32.totalorder %s145, %s148
    %p157 = scmp.eq.s32.totalorder %s15, 3
    %p158 = por %p156, %p157
    %p159 = scmp.ne.s32.totalorder %s148, %s149
    %p160 = scmp.eq.s32.totalorder %s15, 0
    %p161 = por %p159, %p160
    %p162 = scmp.ne.s32.totalorder %s148, %s149
    %p163 = scmp.eq.s32.totalorder %s16, 3
    %p164 = por %p162, %p163
    %p166 = scmp.ne.s32.totalorder %s149, %s165
    %p167 = scmp.eq.s32.totalorder %s16, 0
    %p168 = por %p166, %p167
    %p169 = scmp.le.s32.totalorder 1, %s10
    %p170 = scmp.lt.s32.totalorder %s10, 5
    %p171 = pnand %p169, %p170
    %p172 = pneg %p171
    // Predicated region
    $region9: #{coattention_module.1} parent=5 // pred_check
      _
    $region10: #{coattention_module.1} parent=5 // pred_check_branch
      %174 = sbr.rel (%p171) target = $region12
    $region11: #{coattention_module.1} parent=5 // pred_region
      %s175 = ssub.s32 %s10, 1
      // Predicated region
      $region13: #{coattention_module.1} parent=11 // pred_check
        %p176 = pneg %p110
      $region14: #{coattention_module.1} parent=11 // pred_check_branch
        %178 = sbr.rel (%p176) target = $region16
      $region15: #{coattention_module.1} parent=11 // pred_region
        _
      $region16: #{coattention_module.1} parent=11 // pred_fallthru
        _
      // Predicated region
      $region17: #{coattention_module.1} parent=11 // pred_check
        %p179 = pneg %p131
      $region18: #{coattention_module.1} parent=11 // pred_check_branch
        %181 = sbr.rel (%p179) target = $region20
      $region19: #{coattention_module.1} parent=11 // pred_region
        _
      $region20: #{coattention_module.1} parent=11 // pred_fallthru
        _
    $region12: #{coattention_module.1} parent=5 // pred_fallthru
      _
    %p182 = scmp.lt.s32.totalorder %s10, 4
    // Predicated region
    $region21: #{coattention_module.1} parent=5 // pred_check
      %p183 = pneg %p182
    $region22: #{coattention_module.1} parent=5 // pred_check_branch
      %185 = sbr.rel (%p183) target = $region24
    $region23: #{coattention_module.1} parent=5 // pred_region
      // Predicated region
      $region25: #{coattention_module.1} parent=23 // pred_check
        %p186 = pneg %p53
      $region26: #{coattention_module.1} parent=23 // pred_check_branch
        %188 = sbr.rel (%p186) target = $region28
      $region27: #{coattention_module.1} parent=23 // pred_region
        %s189 = smul.u32 2, %s19
        %p190 = scmp.lt.s32.totalorder %s17, 1
        %s191 = scalar_select %p190, %s17, 1
        %p192 = scmp.lt.s32.totalorder %s18, 1
        %s193 = scalar_select %p192, %s18, 1
        %p194 = scmp.lt.s32.totalorder %s189, 1
        %s195 = scalar_select %p194, %s189, 1
        %s196 = smul.addr %s193, 4
        %s197 = sadd.s32 %s195, %s196
        %s198 = smul.addr %s191, 8
        %s199 = sadd.s32 %s197, %s198
        %s200 = smul.addr %s199, 8
        %s201 = scalar_lea.vmem %s0, %s200
        %s202 = smul.u32 2, %s19
      $region28: #{coattention_module.1} parent=23 // pred_fallthru
        _
      // Predicated region
      $region29: #{coattention_module.1} parent=23 // pred_check
        %p203 = pneg %p83
      $region30: #{coattention_module.1} parent=23 // pred_check_branch
        %205 = sbr.rel (%p203) target = $region32
      $region31: #{coattention_module.1} parent=23 // pred_region
        %s206 = ssub.s32 1, %s17
        %p207 = scmp.lt.s32.totalorder %s206, 1
        %s208 = scalar_select %p207, %s206, 1
        %p209 = scmp.lt.s32.totalorder %s18, 1
        %s210 = scalar_select %p209, %s18, 1
        %s211 = smul.addr %s210, 4
        %s212 = smul.addr %s208, 8
        %s213 = sadd.s32 %s211, %s212
        %s214 = smul.addr %s213, 8
        %s215 = scalar_lea.vmem %s1, %s214
        %s216 = ssub.s32 1, %s17
      $region32: #{coattention_module.1} parent=23 // pred_fallthru
        _
    $region24: #{coattention_module.1} parent=5 // pred_fallthru
      _
    %p217 = scmp.le.s32.totalorder 1, %s10
    %p218 = scmp.lt.s32.totalorder %s10, 5
    %p219 = pnand %p217, %p218
    %p220 = pneg %p219
    // Predicated region
    $region33: #{coattention_module.1} parent=5 // pred_check
      _
    $region34: #{coattention_module.1} parent=5 // pred_check_branch
      %222 = sbr.rel (%p219) target = $region36
    $region35: #{coattention_module.1} parent=5 // pred_region
      %s223 = ssub.s32 %s10, 1
      %s224 = smul.u32 2, %s22
      %p225 = scmp.lt.s32.totalorder %s20, 1
      %s226 = scalar_select %p225, %s20, 1
      %p227 = scmp.lt.s32.totalorder %s21, 1
      %s228 = scalar_select %p227, %s21, 1
      %p229 = scmp.lt.s32.totalorder %s224, 1
      %s230 = scalar_select %p229, %s224, 1
      %s231 = smul.addr %s228, 4
      %s232 = sadd.s32 %s230, %s231
      %s233 = smul.addr %s226, 8
      %s234 = sadd.s32 %s232, %s233
      %s235 = smul.addr %s234, 8
      %s236 = scalar_lea.vmem %s0, %s235
      %p237 = pneg %p59
      %p238 = pneg %p56
      %s239 = ssub.s32 1, %s20
      %p240 = scmp.lt.s32.totalorder %s239, 1
      %s241 = scalar_select %p240, %s239, 1
      %p242 = scmp.lt.s32.totalorder %s21, 1
      %s243 = scalar_select %p242, %s21, 1
      %s244 = smul.addr %s243, 4
      %s245 = smul.addr %s241, 8
      %s246 = sadd.s32 %s244, %s245
      %s247 = smul.addr %s246, 8
      %s248 = scalar_lea.vmem %s1, %s247
      %p249 = pneg %p89
      %p250 = pneg %p86
      %p251 = pneg %p110
      %p252 = pneg %p107
      %p253 = pneg %p131
      %p254 = pneg %p128
      %p255 = pneg %p161
      %p256 = pneg %p158
      %s257 = smul.u32 2, %s22
      %p258 = scmp.lt.s32.totalorder %s20, 1
      %s259 = scalar_select %p258, %s20, 1
      %p260 = scmp.lt.s32.totalorder %s21, 1
      %s261 = scalar_select %p260, %s21, 1
      %p262 = scmp.lt.s32.totalorder %s257, 1
      %s263 = scalar_select %p262, %s257, 1
      %s264 = smul.addr %s261, 4
      %s265 = sadd.s32 %s263, %s264
      %s266 = smul.addr %s259, 8
      %s267 = sadd.s32 %s265, %s266
      %s268 = smul.addr %s267, 8
      %s269 = scalar_lea.vmem %s4, %s268
      %s270 = smul.u32 2, %s22
      %p271 = scmp.lt.s32.totalorder %s20, 1
      %s272 = scalar_select %p271, %s20, 1
      %p273 = scmp.lt.s32.totalorder %s21, 1
      %s274 = scalar_select %p273, %s21, 1
      %p275 = scmp.lt.s32.totalorder %s270, 1
      %s276 = scalar_select %p275, %s270, 1
      %s277 = smul.addr %s274, 4
      %s278 = sadd.s32 %s276, %s277
      %s279 = smul.addr %s272, 8
      %s280 = sadd.s32 %s278, %s279
      %s281 = smul.addr %s280, 8
      %s282 = scalar_lea.vmem %s0, %s281
      %s283 = smul.u32 2, %s22
      %s284 = ssub.s32 1, %s20
      %p285 = scmp.lt.s32.totalorder %s284, 1
      %s286 = scalar_select %p285, %s284, 1
      %p287 = scmp.lt.s32.totalorder %s21, 1
      %s288 = scalar_select %p287, %s21, 1
      %s289 = smul.addr %s288, 4
      %s290 = smul.addr %s286, 8
      %s291 = sadd.s32 %s289, %s290
      %s292 = smul.addr %s291, 8
      %s293 = scalar_lea.vmem %s1, %s292
      %s294 = ssub.s32 1, %s20
      %s295 = smul.u32 2, %s22
      %p296 = scmp.lt.s32.totalorder %s20, 1
      %s297 = scalar_select %p296, %s20, 1
      %p298 = scmp.lt.s32.totalorder %s21, 1
      %s299 = scalar_select %p298, %s21, 1
      %p300 = scmp.lt.s32.totalorder %s295, 1
      %s301 = scalar_select %p300, %s295, 1
      %s302 = smul.addr %s299, 4
      %s303 = sadd.s32 %s301, %s302
      %s304 = smul.addr %s297, 8
      %s305 = sadd.s32 %s303, %s304
      %s306 = smul.addr %s305, 8
      %s307 = scalar_lea.vmem %s4, %s306
      %s308 = smul.u32 2, %s22
      %p310 = scmp.eq.s32.totalorder %s22, 0
      // Predicated region
      $region37: #{coattention_module.1} parent=35 // pred_check
        %p311 = pneg %p310
      $region38: #{coattention_module.1} parent=35 // pred_check_branch
        %313 = sbr.rel (%p311) target = $region40
      $region39: #{coattention_module.1} parent=35 // pred_region
        %v314 = vld [vmem:[%s293] sm:$0xff]
        %v315 = vld [vmem:[%s293 + $0x8] sm:$0xff]
        %v316 = vld [vmem:[%s293 + $0x10] sm:$0x1]
        %v317 = vld [vmem:[%s293 + $0x18] sm:$0x1]
        %v318 = vld [vmem:[%s3] sm:$0xff]
        %v319 = vld [vmem:[%s3 + $0x8] sm:$0x1]
        %320 = vxpose.xlu0.b32.start [1/16] %v318, 128
        %321 = vxpose.xlu0.b32.cont [2/16] %v319, 128
        %322 = vxpose.xlu0.b32.cont [3/16] 0.0, 128
        %323 = vxpose.xlu0.b32.cont [4/16] 0.0, 128
        %324 = vxpose.xlu0.b32.cont [5/16] 0.0, 128
        %325 = vxpose.xlu0.b32.cont [6/16] 0.0, 128
        %326 = vxpose.xlu0.b32.cont [7/16] 0.0, 128
        %327 = vxpose.xlu0.b32.cont [8/16] 0.0, 128
        %328 = vxpose.xlu0.b32.cont [9/16] 0.0, 128
        %329 = vxpose.xlu0.b32.cont [10/16] 0.0, 128
        %330 = vxpose.xlu0.b32.cont [11/16] 0.0, 128
        %331 = vxpose.xlu0.b32.cont [12/16] 0.0, 128
        %332 = vxpose.xlu0.b32.cont [13/16] 0.0, 128
        %333 = vxpose.xlu0.b32.cont [14/16] 0.0, 128
        %334 = vxpose.xlu0.b32.cont [15/16] 0.0, 128
        %335 = vxpose.xlu0.b32.end [16/16] 0.0, 128
        %v336 = vpop.trf.xlu0
        %v337 = vpop.trf.xlu0
        %v338 = vpop.trf.xlu0
        %v339 = vpop.trf.xlu0
        %v340 = vpop.trf.xlu0
        %v341 = vpop.trf.xlu0
        %v342 = vpop.trf.xlu0
        %v343 = vpop.trf.xlu0
        %v344 = vpop.trf.xlu0
        %v345 = vpop.trf.xlu0
        %v346 = vpop.trf.xlu0
        %v347 = vpop.trf.xlu0
        %v348 = vpop.trf.xlu0
        %v349 = vpop.trf.xlu0
        %v350 = vpop.trf.xlu0
        %v351 = vpop.trf.xlu0
        %vm352 = vcmask 72704
        %v354 = vsel %vm352, %v336, 0
        %v357 = vsel %vm352, %v337, 0
        %v360 = vsel %vm352, %v338, 0
        %v363 = vsel %vm352, %v339, 0
        %vm365 = vcmask 1040384
        %v367 = vsel %vm365, %v316, 0
        %v370 = vsel %vm365, %v317, 0
        %372 = vmatprep.subr.mxu0 0.0
        %373 = vmatpush1.msra.mxu0 0.0
        %374 = vmatprep.subr.mxu0 0.0
        %375 = vmatpush1.msra.mxu0 0.0
        %376 = vmatprep.subr.mxu0 0.0
        %377 = vmatpush1.msra.mxu0 0.0
        %378 = vmatprep.subr.mxu0 0.0
        %379 = vmatpush1.msra.mxu0 0.0
        %380 = vmatprep.subr.mxu0 0.0
        %381 = vmatpush1.msra.mxu0 0.0
        %382 = vmatprep.subr.mxu0 0.0
        %383 = vmatpush1.msra.mxu0 0.0
        %384 = vmatprep.subr.mxu0 0.0
        %385 = vmatpush1.msra.mxu0 0.0
        %386 = vmatprep.subr.mxu0 0.0
        %387 = vmatpush1.msra.mxu0 0.0
        %388 = vmatprep.subr.mxu0 0.0
        %389 = vmatpush1.msra.mxu0 0.0
        %390 = vmatprep.subr.mxu0 0.0
        %391 = vmatpush1.msra.mxu0 0.0
        %392 = vmatprep.subr.mxu0 0.0
        %393 = vmatpush1.msra.mxu0 0.0
        %394 = vmatprep.subr.mxu0 0.0
        %395 = vmatpush1.msra.mxu0 0.0
        %396 = vmatprep.subr.mxu0 0.0
        %397 = vmatpush1.msra.mxu0 0.0
        %398 = vmatprep.subr.mxu0 0.0
        %399 = vmatpush1.msra.mxu0 0.0
        %400 = vmatprep.subr.mxu0 %v370
        %401 = vmatpush1.msra.mxu0 %v367
        %402 = vmatprep.subr.mxu0 %v315
        %403 = vmatpush1.msra.mxu0 %v314
        %404 = vmatprep.subr.mxu0 0.0
        %405 = vmatpush2.msra.mxu0 0.0
        %406 = vmatprep.subr.mxu0 0.0
        %407 = vmatpush2.msra.mxu0 0.0
        %408 = vmatprep.subr.mxu0 0.0
        %409 = vmatpush2.msra.mxu0 0.0
        %410 = vmatprep.subr.mxu0 0.0
        %411 = vmatpush2.msra.mxu0 0.0
        %412 = vmatprep.subr.mxu0 0.0
        %413 = vmatpush2.msra.mxu0 0.0
        %414 = vmatprep.subr.mxu0 0.0
        %415 = vmatpush2.msra.mxu0 0.0
        %416 = vmatprep.subr.mxu0 0.0
        %417 = vmatpush2.msra.mxu0 0.0
        %418 = vmatprep.subr.mxu0 0.0
        %419 = vmatpush2.msra.mxu0 0.0
        %420 = vmatprep.subr.mxu0 0.0
        %421 = vmatpush2.msra.mxu0 0.0
        %422 = vmatprep.subr.mxu0 0.0
        %423 = vmatpush2.msra.mxu0 0.0
        %424 = vmatprep.subr.mxu0 0.0
        %425 = vmatpush2.msra.mxu0 0.0
        %426 = vmatprep.subr.mxu0 0.0
        %427 = vmatpush2.msra.mxu0 0.0
        %428 = vmatprep.subr.mxu0 0.0
        %429 = vmatpush2.msra.mxu0 0.0
        %430 = vmatprep.subr.mxu0 0.0
        %431 = vmatpush2.msra.mxu0 0.0
        %432 = vmatprep.subr.mxu0 0.0
        %433 = vmatpush2.msra.mxu0 0.0
        %434 = vmatprep.subr.mxu0 0.0
        %435 = vmatpush2.msra.mxu0 0.0
        %436 = vmatprep.mubr.f32.mxu0 0.0
        %437 = vmatmul.mubr.f32.gmra.mxu0 %v354
        %v438 = vpop.f32.mrf.mxu0
        %v439 = vadd.f32 0.0, %v438
        %v440 = vpop.f32.mrf.mxu0
        %v441 = vadd.f32 0.0, %v440
        %442 = vmatprep.mubr.f32.mxu0 0.0
        %443 = vmatmul.mubr.f32.gmra.mxu0 %v357
        %v444 = vpop.f32.mrf.mxu0
        %v445 = vadd.f32 0.0, %v444
        %v446 = vpop.f32.mrf.mxu0
        %v447 = vadd.f32 0.0, %v446
        %448 = vmatprep.mubr.f32.mxu0 0.0
        %449 = vmatmul.mubr.f32.gmra.mxu0 %v360
        %v450 = vpop.f32.mrf.mxu0
        %v451 = vadd.f32 0.0, %v450
        %v452 = vpop.f32.mrf.mxu0
        %v453 = vadd.f32 0.0, %v452
        %454 = vmatprep.mubr.f32.mxu0 0.0
        %455 = vmatmul.mubr.f32.gmra.mxu0 %v363
        %v456 = vpop.f32.mrf.mxu0
        %v457 = vadd.f32 0.0, %v456
        %v458 = vpop.f32.mrf.mxu0
        %v459 = vadd.f32 0.0, %v458
        %460 = vdwg.mxu0
        %v461 = vpack.c.bf16 %v445, %v439
        %v462 = vpack.c.bf16 %v447, %v441
        %v463 = vpack.c.bf16 %v457, %v451
        %v464 = vpack.c.bf16 %v459, %v453
        %v469 = vunpack.c.l.b16 %v461
        %v470 = vunpack.c.l.b16 %v462
        %v471 = vunpack.c.h.b16 %v461
        %v472 = vunpack.c.h.b16 %v462
        %v473 = vunpack.c.l.b16 %v463
        %v474 = vunpack.c.l.b16 %v464
        %v475 = vunpack.c.h.b16 %v463
        %v476 = vunpack.c.h.b16 %v464
        %v477 = vpack.c.b16 %v470, %v469
        %v478 = vpack.c.b16 %v472, %v471
        %v479 = vpack.c.b16 %v474, %v473
        %v480 = vpack.c.b16 %v476, %v475
        %485 = vst [vmem:[#allocation2] sm:$0xff] %v477
        %486 = vst [vmem:[#allocation2 + $0x8] sm:$0xff] %v478
        %487 = vst [vmem:[#allocation2 + $0x10] sm:$0xff] %v479
        %488 = vst [vmem:[#allocation2 + $0x18] sm:$0xff] %v480
        %v489 = vpack.c.bf16 %v316, %v314
        %v490 = vpack.c.bf16 %v317, %v315
        %v493 = vunpack.c.l.b16 %v489
        %v494 = vunpack.c.l.b16 %v490
        %v495 = vunpack.c.h.b16 %v489
        %v496 = vunpack.c.h.b16 %v490
        %v497 = vpack.c.b16 %v494, %v493
        %v498 = vpack.c.b16 %v496, %v495
        %501 = vst [vmem:[#allocation3] sm:$0xff] %v497
        %vm502 = vcmask 1040384
        %vm503 = vsmask.f32 256
        %vm504 = vmand %vm502, %vm503
        %vm505 = vcmask 1044484
        %vm506 = vsmask.f32 4352
        %vm507 = vmand %vm505, %vm506
        %vm508 = vmor %vm507, %vm504
        %v509 = vld [vmem:[#allocation3 + $0x8] sm:$0x11]
        %v510 = vsel %vm508, %v498, %v509
        %511 = vst [vmem:[#allocation3 + $0x8] sm:$0x11] %v510
      $region40: #{coattention_module.1} parent=35 // pred_fallthru
        _
      %v512 = vld [vmem:[%s282] sm:$0xff]
      %v513 = vld [vmem:[%s282 + $0x8] sm:$0xff]
      %v514 = vld [vmem:[%s282 + $0x10] sm:$0x1]
      %v515 = vld [vmem:[%s282 + $0x18] sm:$0x1]
      %v516 = vld [vmem:[%s2] sm:$0xff]
      %v517 = vld [vmem:[%s2 + $0x8] sm:$0x1]
      %518 = vxpose.xlu0.b32.start [1/16] %v516, 128
      %519 = vxpose.xlu0.b32.cont [2/16] %v517, 128
      %520 = vxpose.xlu0.b32.cont [3/16] 0.0, 128
      %521 = vxpose.xlu0.b32.cont [4/16] 0.0, 128
      %522 = vxpose.xlu0.b32.cont [5/16] 0.0, 128
      %523 = vxpose.xlu0.b32.cont [6/16] 0.0, 128
      %524 = vxpose.xlu0.b32.cont [7/16] 0.0, 128
      %525 = vxpose.xlu0.b32.cont [8/16] 0.0, 128
      %526 = vxpose.xlu0.b32.cont [9/16] 0.0, 128
      %527 = vxpose.xlu0.b32.cont [10/16] 0.0, 128
      %528 = vxpose.xlu0.b32.cont [11/16] 0.0, 128
      %529 = vxpose.xlu0.b32.cont [12/16] 0.0, 128
      %530 = vxpose.xlu0.b32.cont [13/16] 0.0, 128
      %531 = vxpose.xlu0.b32.cont [14/16] 0.0, 128
      %532 = vxpose.xlu0.b32.cont [15/16] 0.0, 128
      %533 = vxpose.xlu0.b32.end [16/16] 0.0, 128
      %v534 = vpop.trf.xlu0
      %v535 = vpop.trf.xlu0
      %v536 = vpop.trf.xlu0
      %v537 = vpop.trf.xlu0
      %v538 = vpop.trf.xlu0
      %v539 = vpop.trf.xlu0
      %v540 = vpop.trf.xlu0
      %v541 = vpop.trf.xlu0
      %v542 = vpop.trf.xlu0
      %v543 = vpop.trf.xlu0
      %v544 = vpop.trf.xlu0
      %v545 = vpop.trf.xlu0
      %v546 = vpop.trf.xlu0
      %v547 = vpop.trf.xlu0
      %v548 = vpop.trf.xlu0
      %v549 = vpop.trf.xlu0
      %vm550 = vcmask 72704
      %v552 = vsel %vm550, %v534, 0
      %v555 = vsel %vm550, %v535, 0
      %v558 = vsel %vm550, %v536, 0
      %v561 = vsel %vm550, %v537, 0
      %vm563 = vcmask 1040384
      %v565 = vsel %vm563, %v514, 0
      %v568 = vsel %vm563, %v515, 0
      %570 = vmatprep.subr.mxu0 0.0
      %571 = vmatpush1.msra.mxu0 0.0
      %572 = vmatprep.subr.mxu0 0.0
      %573 = vmatpush1.msra.mxu0 0.0
      %574 = vmatprep.subr.mxu0 0.0
      %575 = vmatpush1.msra.mxu0 0.0
      %576 = vmatprep.subr.mxu0 0.0
      %577 = vmatpush1.msra.mxu0 0.0
      %578 = vmatprep.subr.mxu0 0.0
      %579 = vmatpush1.msra.mxu0 0.0
      %580 = vmatprep.subr.mxu0 0.0
      %581 = vmatpush1.msra.mxu0 0.0
      %582 = vmatprep.subr.mxu0 0.0
      %583 = vmatpush1.msra.mxu0 0.0
      %584 = vmatprep.subr.mxu0 0.0
      %585 = vmatpush1.msra.mxu0 0.0
      %586 = vmatprep.subr.mxu0 0.0
      %587 = vmatpush1.msra.mxu0 0.0
      %588 = vmatprep.subr.mxu0 0.0
      %589 = vmatpush1.msra.mxu0 0.0
      %590 = vmatprep.subr.mxu0 0.0
      %591 = vmatpush1.msra.mxu0 0.0
      %592 = vmatprep.subr.mxu0 0.0
      %593 = vmatpush1.msra.mxu0 0.0
      %594 = vmatprep.subr.mxu0 0.0
      %595 = vmatpush1.msra.mxu0 0.0
      %596 = vmatprep.subr.mxu0 0.0
      %597 = vmatpush1.msra.mxu0 0.0
      %598 = vmatprep.subr.mxu0 %v568
      %599 = vmatpush1.msra.mxu0 %v565
      %600 = vmatprep.subr.mxu0 %v513
      %601 = vmatpush1.msra.mxu0 %v512
      %602 = vmatprep.subr.mxu0 0.0
      %603 = vmatpush2.msra.mxu0 0.0
      %604 = vmatprep.subr.mxu0 0.0
      %605 = vmatpush2.msra.mxu0 0.0
      %606 = vmatprep.subr.mxu0 0.0
      %607 = vmatpush2.msra.mxu0 0.0
      %608 = vmatprep.subr.mxu0 0.0
      %609 = vmatpush2.msra.mxu0 0.0
      %610 = vmatprep.subr.mxu0 0.0
      %611 = vmatpush2.msra.mxu0 0.0
      %612 = vmatprep.subr.mxu0 0.0
      %613 = vmatpush2.msra.mxu0 0.0
      %614 = vmatprep.subr.mxu0 0.0
      %615 = vmatpush2.msra.mxu0 0.0
      %616 = vmatprep.subr.mxu0 0.0
      %617 = vmatpush2.msra.mxu0 0.0
      %618 = vmatprep.subr.mxu0 0.0
      %619 = vmatpush2.msra.mxu0 0.0
      %620 = vmatprep.subr.mxu0 0.0
      %621 = vmatpush2.msra.mxu0 0.0
      %622 = vmatprep.subr.mxu0 0.0
      %623 = vmatpush2.msra.mxu0 0.0
      %624 = vmatprep.subr.mxu0 0.0
      %625 = vmatpush2.msra.mxu0 0.0
      %626 = vmatprep.subr.mxu0 0.0
      %627 = vmatpush2.msra.mxu0 0.0
      %628 = vmatprep.subr.mxu0 0.0
      %629 = vmatpush2.msra.mxu0 0.0
      %630 = vmatprep.subr.mxu0 0.0
      %631 = vmatpush2.msra.mxu0 0.0
      %632 = vmatprep.subr.mxu0 0.0
      %633 = vmatpush2.msra.mxu0 0.0
      %634 = vmatprep.mubr.f32.mxu0 0.0
      %635 = vmatmul.mubr.f32.gmra.mxu0 %v552
      %v636 = vpop.f32.mrf.mxu0
      %v637 = vadd.f32 0.0, %v636
      %v638 = vpop.f32.mrf.mxu0
      %v639 = vadd.f32 0.0, %v638
      %640 = vmatprep.mubr.f32.mxu0 0.0
      %641 = vmatmul.mubr.f32.gmra.mxu0 %v555
      %v642 = vpop.f32.mrf.mxu0
      %v643 = vadd.f32 0.0, %v642
      %v644 = vpop.f32.mrf.mxu0
      %v645 = vadd.f32 0.0, %v644
      %646 = vmatprep.mubr.f32.mxu0 0.0
      %647 = vmatmul.mubr.f32.gmra.mxu0 %v558
      %v648 = vpop.f32.mrf.mxu0
      %v649 = vadd.f32 0.0, %v648
      %v650 = vpop.f32.mrf.mxu0
      %v651 = vadd.f32 0.0, %v650
      %652 = vmatprep.mubr.f32.mxu0 0.0
      %653 = vmatmul.mubr.f32.gmra.mxu0 %v561
      %v654 = vpop.f32.mrf.mxu0
      %v655 = vadd.f32 0.0, %v654
      %v656 = vpop.f32.mrf.mxu0
      %v657 = vadd.f32 0.0, %v656
      %658 = vdwg.mxu0
      %v659 = vld [vmem:[#allocation2] sm:$0xff]
      %v660 = vld [vmem:[#allocation2 + $0x8] sm:$0xff]
      %v661 = vld [vmem:[#allocation2 + $0x10] sm:$0xff]
      %v662 = vld [vmem:[#allocation2 + $0x18] sm:$0xff]
      %v663 = vpack.c.bf16 %v643, %v637
      %v664 = vpack.c.bf16 %v645, %v639
      %v665 = vpack.c.bf16 %v655, %v649
      %v666 = vpack.c.bf16 %v657, %v651
      %v671 = vunpack.c.l.b16 %v659
      %v672 = vunpack.c.h.b16 %v659
      %v673 = vunpack.c.l.b16 %v660
      %v674 = vunpack.c.h.b16 %v660
      %v675 = vunpack.c.l.b16 %v661
      %v676 = vunpack.c.h.b16 %v661
      %v677 = vunpack.c.l.b16 %v662
      %v678 = vunpack.c.h.b16 %v662
      %v679 = vpack.c.b16 %v673, %v671
      %v680 = vpack.c.b16 %v674, %v672
      %v681 = vpack.c.b16 %v677, %v675
      %v682 = vpack.c.b16 %v678, %v676
      %687 = vxpose.xlu0.c.b16.start [1/8] %v679, 128
      %688 = vxpose.xlu0.c.b16.cont [2/8] %v681, 128
      %689 = vxpose.xlu0.c.b16.cont [3/8] 0, 128
      %690 = vxpose.xlu0.c.b16.cont [4/8] 0, 128
      %691 = vxpose.xlu0.c.b16.cont [5/8] 0, 128
      %692 = vxpose.xlu0.c.b16.cont [6/8] 0, 128
      %693 = vxpose.xlu0.c.b16.cont [7/8] 0, 128
      %694 = vxpose.xlu0.c.b16.end [8/8] 0, 128
      %v695 = vpop.trf.xlu0
      %v696 = vpop.trf.xlu0
      %v697 = vpop.trf.xlu0
      %v698 = vpop.trf.xlu0
      %v699 = vpop.trf.xlu0
      %v700 = vpop.trf.xlu0
      %v701 = vpop.trf.xlu0
      %v702 = vpop.trf.xlu0
      %703 = vxpose.xlu0.c.b16.start [1/8] %v680, 128
      %704 = vxpose.xlu0.c.b16.cont [2/8] %v682, 128
      %705 = vxpose.xlu0.c.b16.cont [3/8] 0, 128
      %706 = vxpose.xlu0.c.b16.cont [4/8] 0, 128
      %707 = vxpose.xlu0.c.b16.cont [5/8] 0, 128
      %708 = vxpose.xlu0.c.b16.cont [6/8] 0, 128
      %709 = vxpose.xlu0.c.b16.cont [7/8] 0, 128
      %710 = vxpose.xlu0.c.b16.end [8/8] 0, 128
      %v711 = vpop.trf.xlu0
      %v712 = vpop.trf.xlu0
      %v713 = vpop.trf.xlu0
      %v714 = vpop.trf.xlu0
      %v715 = vpop.trf.xlu0
      %v716 = vpop.trf.xlu0
      %v717 = vpop.trf.xlu0
      %v718 = vpop.trf.xlu0
      %vm719 = vcmask 261120
      %v721 = vsel %vm719, %v695, 0
      %v724 = vsel %vm719, %v696, 0
      %v727 = vsel %vm719, %v697, 0
      %v730 = vsel %vm719, %v698, 0
      %v733 = vsel %vm719, %v699, 0
      %v736 = vsel %vm719, %v700, 0
      %v739 = vsel %vm719, %v701, 0
      %v742 = vsel %vm719, %v702, 0
      %v745 = vsel %vm719, %v711, 0
      %v748 = vsel %vm719, %v712, 0
      %v751 = vsel %vm719, %v713, 0
      %v754 = vsel %vm719, %v714, 0
      %v757 = vsel %vm719, %v715, 0
      %v760 = vsel %vm719, %v716, 0
      %v763 = vsel %vm719, %v717, 0
      %v766 = vsel %vm719, %v718, 0
      %768 = vmatprep.subr.bf16.mxu0 0
      %769 = vmatpush1.bf16.msra.mxu0 0
      %770 = vmatprep.subr.bf16.mxu0 0
      %771 = vmatpush1.bf16.msra.mxu0 0
      %772 = vmatprep.subr.bf16.mxu0 0
      %773 = vmatpush1.bf16.msra.mxu0 0
      %774 = vmatprep.subr.bf16.mxu0 0
      %775 = vmatpush1.bf16.msra.mxu0 0
      %776 = vmatprep.subr.bf16.mxu0 0
      %777 = vmatpush1.bf16.msra.mxu0 0
      %778 = vmatprep.subr.bf16.mxu0 0
      %779 = vmatpush1.bf16.msra.mxu0 0
      %780 = vmatprep.subr.bf16.mxu0 %v666
      %781 = vmatpush1.bf16.msra.mxu0 %v665
      %782 = vmatprep.subr.bf16.mxu0 %v664
      %783 = vmatpush1.bf16.msra.mxu0 %v663
      %784 = vmatprep.subr.bf16.mxu0 0
      %785 = vmatpush2.bf16.msra.mxu0 0
      %786 = vmatprep.subr.bf16.mxu0 0
      %787 = vmatpush2.bf16.msra.mxu0 0
      %788 = vmatprep.subr.bf16.mxu0 0
      %789 = vmatpush2.bf16.msra.mxu0 0
      %790 = vmatprep.subr.bf16.mxu0 0
      %791 = vmatpush2.bf16.msra.mxu0 0
      %792 = vmatprep.subr.bf16.mxu0 0
      %793 = vmatpush2.bf16.msra.mxu0 0
      %794 = vmatprep.subr.bf16.mxu0 0
      %795 = vmatpush2.bf16.msra.mxu0 0
      %796 = vmatprep.subr.bf16.mxu0 0
      %797 = vmatpush2.bf16.msra.mxu0 0
      %798 = vmatprep.subr.bf16.mxu0 0
      %799 = vmatpush2.bf16.msra.mxu0 0
      %800 = vmatprep.mubr.bf16.mxu0 0
      %801 = vmatmul.mubr.bf16.gmra.mxu0 %v721
      %v802 = vpop.f32.mrf.mxu0
      %v803 = vadd.f32 0.0, %v802
      %v804 = vpop.f32.mrf.mxu0
      %v805 = vadd.f32 0.0, %v804
      %v806 = vpop.f32.mrf.mxu0
      %v807 = vadd.f32 0.0, %v806
      %v808 = vpop.f32.mrf.mxu0
      %v809 = vadd.f32 0.0, %v808
      %810 = vmatprep.mubr.bf16.mxu0 0
      %811 = vmatmul.mubr.bf16.gmra.mxu0 %v724
      %v812 = vpop.f32.mrf.mxu0
      %v813 = vadd.f32 0.0, %v812
      %v814 = vpop.f32.mrf.mxu0
      %v815 = vadd.f32 0.0, %v814
      %v816 = vpop.f32.mrf.mxu0
      %v817 = vadd.f32 0.0, %v816
      %v818 = vpop.f32.mrf.mxu0
      %v819 = vadd.f32 0.0, %v818
      %820 = vmatprep.mubr.bf16.mxu0 0
      %821 = vmatmul.mubr.bf16.gmra.mxu0 %v727
      %v822 = vpop.f32.mrf.mxu0
      %v823 = vadd.f32 0.0, %v822
      %v824 = vpop.f32.mrf.mxu0
      %v825 = vadd.f32 0.0, %v824
      %v826 = vpop.f32.mrf.mxu0
      %v827 = vadd.f32 0.0, %v826
      %v828 = vpop.f32.mrf.mxu0
      %v829 = vadd.f32 0.0, %v828
      %830 = vmatprep.mubr.bf16.mxu0 0
      %831 = vmatmul.mubr.bf16.gmra.mxu0 %v730
      %v832 = vpop.f32.mrf.mxu0
      %v833 = vadd.f32 0.0, %v832
      %v834 = vpop.f32.mrf.mxu0
      %v835 = vadd.f32 0.0, %v834
      %v836 = vpop.f32.mrf.mxu0
      %v837 = vadd.f32 0.0, %v836
      %v838 = vpop.f32.mrf.mxu0
      %v839 = vadd.f32 0.0, %v838
      %840 = vmatprep.mubr.bf16.mxu0 0
      %841 = vmatmul.mubr.bf16.gmra.mxu0 %v733
      %v842 = vpop.f32.mrf.mxu0
      %v843 = vadd.f32 0.0, %v842
      %v844 = vpop.f32.mrf.mxu0
      %v845 = vadd.f32 0.0, %v844
      %v846 = vpop.f32.mrf.mxu0
      %v847 = vadd.f32 0.0, %v846
      %v848 = vpop.f32.mrf.mxu0
      %v849 = vadd.f32 0.0, %v848
      %850 = vmatprep.mubr.bf16.mxu0 0
      %851 = vmatmul.mubr.bf16.gmra.mxu0 %v736
      %v852 = vpop.f32.mrf.mxu0
      %v853 = vadd.f32 0.0, %v852
      %v854 = vpop.f32.mrf.mxu0
      %v855 = vadd.f32 0.0, %v854
      %v856 = vpop.f32.mrf.mxu0
      %v857 = vadd.f32 0.0, %v856
      %v858 = vpop.f32.mrf.mxu0
      %v859 = vadd.f32 0.0, %v858
      %860 = vmatprep.mubr.bf16.mxu0 0
      %861 = vmatmul.mubr.bf16.gmra.mxu0 %v739
      %v862 = vpop.f32.mrf.mxu0
      %v863 = vadd.f32 0.0, %v862
      %v864 = vpop.f32.mrf.mxu0
      %v865 = vadd.f32 0.0, %v864
      %v866 = vpop.f32.mrf.mxu0
      %v867 = vadd.f32 0.0, %v866
      %v868 = vpop.f32.mrf.mxu0
      %v869 = vadd.f32 0.0, %v868
      %870 = vmatprep.mubr.bf16.mxu0 0
      %871 = vmatmul.mubr.bf16.gmra.mxu0 %v742
      %v872 = vpop.f32.mrf.mxu0
      %v873 = vadd.f32 0.0, %v872
      %v874 = vpop.f32.mrf.mxu0
      %v875 = vadd.f32 0.0, %v874
      %v876 = vpop.f32.mrf.mxu0
      %v877 = vadd.f32 0.0, %v876
      %v878 = vpop.f32.mrf.mxu0
      %v879 = vadd.f32 0.0, %v878
      %880 = vmatprep.mubr.bf16.mxu0 0
      %881 = vmatmul.mubr.bf16.gmra.mxu0 %v745
      %v882 = vpop.f32.mrf.mxu0
      %v883 = vadd.f32 0.0, %v882
      %v884 = vpop.f32.mrf.mxu0
      %v885 = vadd.f32 0.0, %v884
      %v886 = vpop.f32.mrf.mxu0
      %v887 = vadd.f32 0.0, %v886
      %v888 = vpop.f32.mrf.mxu0
      %v889 = vadd.f32 0.0, %v888
      %890 = vmatprep.mubr.bf16.mxu0 0
      %891 = vmatmul.mubr.bf16.gmra.mxu0 %v748
      %v892 = vpop.f32.mrf.mxu0
      %v893 = vadd.f32 0.0, %v892
      %v894 = vpop.f32.mrf.mxu0
      %v895 = vadd.f32 0.0, %v894
      %v896 = vpop.f32.mrf.mxu0
      %v897 = vadd.f32 0.0, %v896
      %v898 = vpop.f32.mrf.mxu0
      %v899 = vadd.f32 0.0, %v898
      %900 = vmatprep.mubr.bf16.mxu0 0
      %901 = vmatmul.mubr.bf16.gmra.mxu0 %v751
      %v902 = vpop.f32.mrf.mxu0
      %v903 = vadd.f32 0.0, %v902
      %v904 = vpop.f32.mrf.mxu0
      %v905 = vadd.f32 0.0, %v904
      %v906 = vpop.f32.mrf.mxu0
      %v907 = vadd.f32 0.0, %v906
      %v908 = vpop.f32.mrf.mxu0
      %v909 = vadd.f32 0.0, %v908
      %910 = vmatprep.mubr.bf16.mxu0 0
      %911 = vmatmul.mubr.bf16.gmra.mxu0 %v754
      %v912 = vpop.f32.mrf.mxu0
      %v913 = vadd.f32 0.0, %v912
      %v914 = vpop.f32.mrf.mxu0
      %v915 = vadd.f32 0.0, %v914
      %v916 = vpop.f32.mrf.mxu0
      %v917 = vadd.f32 0.0, %v916
      %v918 = vpop.f32.mrf.mxu0
      %v919 = vadd.f32 0.0, %v918
      %920 = vmatprep.mubr.bf16.mxu0 0
      %921 = vmatmul.mubr.bf16.gmra.mxu0 %v757
      %v922 = vpop.f32.mrf.mxu0
      %v923 = vadd.f32 0.0, %v922
      %v924 = vpop.f32.mrf.mxu0
      %v925 = vadd.f32 0.0, %v924
      %v926 = vpop.f32.mrf.mxu0
      %v927 = vadd.f32 0.0, %v926
      %v928 = vpop.f32.mrf.mxu0
      %v929 = vadd.f32 0.0, %v928
      %930 = vmatprep.mubr.bf16.mxu0 0
      %931 = vmatmul.mubr.bf16.gmra.mxu0 %v760
      %v932 = vpop.f32.mrf.mxu0
      %v933 = vadd.f32 0.0, %v932
      %v934 = vpop.f32.mrf.mxu0
      %v935 = vadd.f32 0.0, %v934
      %v936 = vpop.f32.mrf.mxu0
      %v937 = vadd.f32 0.0, %v936
      %v938 = vpop.f32.mrf.mxu0
      %v939 = vadd.f32 0.0, %v938
      %940 = vmatprep.mubr.bf16.mxu0 0
      %941 = vmatmul.mubr.bf16.gmra.mxu0 %v763
      %v942 = vpop.f32.mrf.mxu0
      %v943 = vadd.f32 0.0, %v942
      %v944 = vpop.f32.mrf.mxu0
      %v945 = vadd.f32 0.0, %v944
      %v946 = vpop.f32.mrf.mxu0
      %v947 = vadd.f32 0.0, %v946
      %v948 = vpop.f32.mrf.mxu0
      %v949 = vadd.f32 0.0, %v948
      %950 = vmatprep.mubr.bf16.mxu0 0
      %951 = vmatmul.mubr.bf16.gmra.mxu0 %v766
      %v952 = vpop.f32.mrf.mxu0
      %v953 = vadd.f32 0.0, %v952
      %v954 = vpop.f32.mrf.mxu0
      %v955 = vadd.f32 0.0, %v954
      %v956 = vpop.f32.mrf.mxu0
      %v957 = vadd.f32 0.0, %v956
      %v958 = vpop.f32.mrf.mxu0
      %v959 = vadd.f32 0.0, %v958
      %960 = vdwg.mxu0
      %v961 = vmax.f32 %v803, %v813
      %v962 = vmax.f32 %v807, %v817
      %v963 = vmax.f32 %v961, %v823
      %v964 = vmax.f32 %v962, %v827
      %v965 = vmax.f32 %v963, %v833
      %v966 = vmax.f32 %v964, %v837
      %v967 = vmax.f32 %v965, %v843
      %v968 = vmax.f32 %v966, %v847
      %v969 = vmax.f32 %v967, %v853
      %v970 = vmax.f32 %v968, %v857
      %v971 = vmax.f32 %v969, %v863
      %v972 = vmax.f32 %v970, %v867
      %v973 = vmax.f32 %v971, %v873
      %v974 = vmax.f32 %v972, %v877
      %v975 = vmax.f32 %v973, %v883
      %v976 = vmax.f32 %v974, %v887
      %v977 = vmax.f32 %v975, %v893
      %v978 = vmax.f32 %v976, %v897
      %v979 = vmax.f32 %v977, %v903
      %v980 = vmax.f32 %v978, %v907
      %v981 = vmax.f32 %v979, %v913
      %v982 = vmax.f32 %v980, %v917
      %v983 = vmax.f32 %v981, %v923
      %v984 = vmax.f32 %v982, %v927
      %v985 = vmax.f32 %v983, %v933
      %v986 = vmax.f32 %v984, %v937
      %v987 = vmax.f32 %v985, %v943
      %v988 = vmax.f32 %v986, %v947
      %v989 = vmax.f32 %v987, %v953
      %v990 = vmax.f32 %v988, %v957
      %v991 = vmax.f32 %v989, %v990
      %v992 = vrot.slane %v991, 4
      %v993 = vmax.f32 %v991, %v992
      %v994 = vrot.slane %v993, 2
      %v995 = vmax.f32 %v993, %v994
      %v996 = vrot.slane %v995, 1
      %v997 = vmax.f32 %v995, %v996
      %v998 = vmax.f32 %v805, %v815
      %v999 = vmax.f32 %v809, %v819
      %v1000 = vmax.f32 %v998, %v825
      %v1001 = vmax.f32 %v999, %v829
      %v1002 = vmax.f32 %v1000, %v835
      %v1003 = vmax.f32 %v1001, %v839
      %v1004 = vmax.f32 %v1002, %v845
      %v1005 = vmax.f32 %v1003, %v849
      %v1006 = vmax.f32 %v1004, %v855
      %v1007 = vmax.f32 %v1005, %v859
      %v1008 = vmax.f32 %v1006, %v865
      %v1009 = vmax.f32 %v1007, %v869
      %v1010 = vmax.f32 %v1008, %v875
      %v1011 = vmax.f32 %v1009, %v879
      %v1012 = vmax.f32 %v1010, %v885
      %v1013 = vmax.f32 %v1011, %v889
      %v1014 = vmax.f32 %v1012, %v895
      %v1015 = vmax.f32 %v1013, %v899
      %v1016 = vmax.f32 %v1014, %v905
      %v1017 = vmax.f32 %v1015, %v909
      %v1018 = vmax.f32 %v1016, %v915
      %v1019 = vmax.f32 %v1017, %v919
      %v1020 = vmax.f32 %v1018, %v925
      %v1021 = vmax.f32 %v1019, %v929
      %v1022 = vmax.f32 %v1020, %v935
      %v1023 = vmax.f32 %v1021, %v939
      %v1024 = vmax.f32 %v1022, %v945
      %v1025 = vmax.f32 %v1023, %v949
      %v1026 = vmax.f32 %v1024, %v955
      %v1027 = vmax.f32 %v1025, %v959
      %v1028 = vmax.f32 %v1026, %v1027
      %v1029 = vrot.slane %v1028, 4
      %v1030 = vmax.f32 %v1028, %v1029
      %v1031 = vrot.slane %v1030, 2
      %v1032 = vmax.f32 %v1030, %v1031
      %v1033 = vrot.slane %v1032, 1
      %v1034 = vmax.f32 %v1032, %v1033
      %v1035 = vsub.f32 %v803, %v997
      %v1036 = vsub.f32 %v805, %v1034
      %v1037 = vsub.f32 %v807, %v997
      %v1038 = vsub.f32 %v809, %v1034
      %v1039 = vsub.f32 %v813, %v997
      %v1040 = vsub.f32 %v815, %v1034
      %v1041 = vsub.f32 %v817, %v997
      %v1042 = vsub.f32 %v819, %v1034
      %v1043 = vsub.f32 %v823, %v997
      %v1044 = vsub.f32 %v825, %v1034
      %v1045 = vsub.f32 %v827, %v997
      %v1046 = vsub.f32 %v829, %v1034
      %v1047 = vsub.f32 %v833, %v997
      %v1048 = vsub.f32 %v835, %v1034
      %v1049 = vsub.f32 %v837, %v997
      %v1050 = vsub.f32 %v839, %v1034
      %v1051 = vsub.f32 %v843, %v997
      %v1052 = vsub.f32 %v845, %v1034
      %v1053 = vsub.f32 %v847, %v997
      %v1054 = vsub.f32 %v849, %v1034
      %v1055 = vsub.f32 %v853, %v997
      %v1056 = vsub.f32 %v855, %v1034
      %v1057 = vsub.f32 %v857, %v997
      %v1058 = vsub.f32 %v859, %v1034
      %v1059 = vsub.f32 %v863, %v997
      %v1060 = vsub.f32 %v865, %v1034
      %v1061 = vsub.f32 %v867, %v997
      %v1062 = vsub.f32 %v869, %v1034
      %v1063 = vsub.f32 %v873, %v997
      %v1064 = vsub.f32 %v875, %v1034
      %v1065 = vsub.f32 %v877, %v997
      %v1066 = vsub.f32 %v879, %v1034
      %v1067 = vsub.f32 %v883, %v997
      %v1068 = vsub.f32 %v885, %v1034
      %v1069 = vsub.f32 %v887, %v997
      %v1070 = vsub.f32 %v889, %v1034
      %v1071 = vsub.f32 %v893, %v997
      %v1072 = vsub.f32 %v895, %v1034
      %v1073 = vsub.f32 %v897, %v997
      %v1074 = vsub.f32 %v899, %v1034
      %v1075 = vsub.f32 %v903, %v997
      %v1076 = vsub.f32 %v905, %v1034
      %v1077 = vsub.f32 %v907, %v997
      %v1078 = vsub.f32 %v909, %v1034
      %v1079 = vsub.f32 %v913, %v997
      %v1080 = vsub.f32 %v915, %v1034
      %v1081 = vsub.f32 %v917, %v997
      %v1082 = vsub.f32 %v919, %v1034
      %v1083 = vsub.f32 %v923, %v997
      %v1084 = vsub.f32 %v925, %v1034
      %v1085 = vsub.f32 %v927, %v997
      %v1086 = vsub.f32 %v929, %v1034
      %v1087 = vsub.f32 %v933, %v997
      %v1088 = vsub.f32 %v935, %v1034
      %v1089 = vsub.f32 %v937, %v997
      %v1090 = vsub.f32 %v939, %v1034
      %v1091 = vsub.f32 %v943, %v997
      %v1092 = vsub.f32 %v945, %v1034
      %v1093 = vsub.f32 %v947, %v997
      %v1094 = vsub.f32 %v949, %v1034
      %v1095 = vsub.f32 %v953, %v997
      %v1096 = vsub.f32 %v955, %v1034
      %v1097 = vsub.f32 %v957, %v997
      %v1098 = vsub.f32 %v959, %v1034
      %v1099 = vmul.f32 %v1035, 1.442695
      %v1100 = vpow.pop %v1099
      %v1101 = vmul.f32 %v1036, 1.442695
      %v1102 = vpow.pop %v1101
      %v1103 = vmul.f32 %v1037, 1.442695
      %v1104 = vpow.pop %v1103
      %v1105 = vmul.f32 %v1038, 1.442695
      %v1106 = vpow.pop %v1105
      %v1107 = vmul.f32 %v1039, 1.442695
      %v1108 = vpow.pop %v1107
      %v1109 = vmul.f32 %v1040, 1.442695
      %v1110 = vpow.pop %v1109
      %v1111 = vmul.f32 %v1041, 1.442695
      %v1112 = vpow.pop %v1111
      %v1113 = vmul.f32 %v1042, 1.442695
      %v1114 = vpow.pop %v1113
      %v1115 = vmul.f32 %v1043, 1.442695
      %v1116 = vpow.pop %v1115
      %v1117 = vmul.f32 %v1044, 1.442695
      %v1118 = vpow.pop %v1117
      %v1119 = vmul.f32 %v1045, 1.442695
      %v1120 = vpow.pop %v1119
      %v1121 = vmul.f32 %v1046, 1.442695
      %v1122 = vpow.pop %v1121
      %v1123 = vmul.f32 %v1047, 1.442695
      %v1124 = vpow.pop %v1123
      %v1125 = vmul.f32 %v1048, 1.442695
      %v1126 = vpow.pop %v1125
      %v1127 = vmul.f32 %v1049, 1.442695
      %v1128 = vpow.pop %v1127
      %v1129 = vmul.f32 %v1050, 1.442695
      %v1130 = vpow.pop %v1129
      %v1131 = vmul.f32 %v1051, 1.442695
      %v1132 = vpow.pop %v1131
      %v1133 = vmul.f32 %v1052, 1.442695
      %v1134 = vpow.pop %v1133
      %v1135 = vmul.f32 %v1053, 1.442695
      %v1136 = vpow.pop %v1135
      %v1137 = vmul.f32 %v1054, 1.442695
      %v1138 = vpow.pop %v1137
      %v1139 = vmul.f32 %v1055, 1.442695
      %v1140 = vpow.pop %v1139
      %v1141 = vmul.f32 %v1056, 1.442695
      %v1142 = vpow.pop %v1141
      %v1143 = vmul.f32 %v1057, 1.442695
      %v1144 = vpow.pop %v1143
      %v1145 = vmul.f32 %v1058, 1.442695
      %v1146 = vpow.pop %v1145
      %v1147 = vmul.f32 %v1059, 1.442695
      %v1148 = vpow.pop %v1147
      %v1149 = vmul.f32 %v1060, 1.442695
      %v1150 = vpow.pop %v1149
      %v1151 = vmul.f32 %v1061, 1.442695
      %v1152 = vpow.pop %v1151
      %v1153 = vmul.f32 %v1062, 1.442695
      %v1154 = vpow.pop %v1153
      %v1155 = vmul.f32 %v1063, 1.442695
      %v1156 = vpow.pop %v1155
      %v1157 = vmul.f32 %v1064, 1.442695
      %v1158 = vpow.pop %v1157
      %v1159 = vmul.f32 %v1065, 1.442695
      %v1160 = vpow.pop %v1159
      %v1161 = vmul.f32 %v1066, 1.442695
      %v1162 = vpow.pop %v1161
      %v1163 = vmul.f32 %v1067, 1.442695
      %v1164 = vpow.pop %v1163
      %v1165 = vmul.f32 %v1068, 1.442695
      %v1166 = vpow.pop %v1165
      %v1167 = vmul.f32 %v1069, 1.442695
      %v1168 = vpow.pop %v1167
      %v1169 = vmul.f32 %v1070, 1.442695
      %v1170 = vpow.pop %v1169
      %v1171 = vmul.f32 %v1071, 1.442695
      %v1172 = vpow.pop %v1171
      %v1173 = vmul.f32 %v1072, 1.442695
      %v1174 = vpow.pop %v1173
      %v1175 = vmul.f32 %v1073, 1.442695
      %v1176 = vpow.pop %v1175
      %v1177 = vmul.f32 %v1074, 1.442695
      %v1178 = vpow.pop %v1177
      %v1179 = vmul.f32 %v1075, 1.442695
      %v1180 = vpow.pop %v1179
      %v1181 = vmul.f32 %v1076, 1.442695
      %v1182 = vpow.pop %v1181
      %v1183 = vmul.f32 %v1077, 1.442695
      %v1184 = vpow.pop %v1183
      %v1185 = vmul.f32 %v1078, 1.442695
      %v1186 = vpow.pop %v1185
      %v1187 = vmul.f32 %v1079, 1.442695
      %v1188 = vpow.pop %v1187
      %v1189 = vmul.f32 %v1080, 1.442695
      %v1190 = vpow.pop %v1189
      %v1191 = vmul.f32 %v1081, 1.442695
      %v1192 = vpow.pop %v1191
      %v1193 = vmul.f32 %v1082, 1.442695
      %v1194 = vpow.pop %v1193
      %v1195 = vmul.f32 %v1083, 1.442695
      %v1196 = vpow.pop %v1195
      %v1197 = vmul.f32 %v1084, 1.442695
      %v1198 = vpow.pop %v1197
      %v1199 = vmul.f32 %v1085, 1.442695
      %v1200 = vpow.pop %v1199
      %v1201 = vmul.f32 %v1086, 1.442695
      %v1202 = vpow.pop %v1201
      %v1203 = vmul.f32 %v1087, 1.442695
      %v1204 = vpow.pop %v1203
      %v1205 = vmul.f32 %v1088, 1.442695
      %v1206 = vpow.pop %v1205
      %v1207 = vmul.f32 %v1089, 1.442695
      %v1208 = vpow.pop %v1207
      %v1209 = vmul.f32 %v1090, 1.442695
      %v1210 = vpow.pop %v1209
      %v1211 = vmul.f32 %v1091, 1.442695
      %v1212 = vpow.pop %v1211
      %v1213 = vmul.f32 %v1092, 1.442695
      %v1214 = vpow.pop %v1213
      %v1215 = vmul.f32 %v1093, 1.442695
      %v1216 = vpow.pop %v1215
      %v1217 = vmul.f32 %v1094, 1.442695
      %v1218 = vpow.pop %v1217
      %v1219 = vmul.f32 %v1095, 1.442695
      %v1220 = vpow.pop %v1219
      %v1221 = vmul.f32 %v1096, 1.442695
      %v1222 = vpow.pop %v1221
      %v1223 = vmul.f32 %v1097, 1.442695
      %v1224 = vpow.pop %v1223
      %v1225 = vmul.f32 %v1098, 1.442695
      %v1226 = vpow.pop %v1225
      %v1227 = vpack.c.bf16 %v1104, %v1100
      %v1228 = vpack.c.bf16 %v1106, %v1102
      %v1229 = vpack.c.bf16 %v1112, %v1108
      %v1230 = vpack.c.bf16 %v1114, %v1110
      %v1231 = vpack.c.bf16 %v1120, %v1116
      %v1232 = vpack.c.bf16 %v1122, %v1118
      %v1233 = vpack.c.bf16 %v1128, %v1124
      %v1234 = vpack.c.bf16 %v1130, %v1126
      %v1235 = vpack.c.bf16 %v1136, %v1132
      %v1236 = vpack.c.bf16 %v1138, %v1134
      %v1237 = vpack.c.bf16 %v1144, %v1140
      %v1238 = vpack.c.bf16 %v1146, %v1142
      %v1239 = vpack.c.bf16 %v1152, %v1148
      %v1240 = vpack.c.bf16 %v1154, %v1150
      %v1241 = vpack.c.bf16 %v1160, %v1156
      %v1242 = vpack.c.bf16 %v1162, %v1158
      %v1243 = vpack.c.bf16 %v1168, %v1164
      %v1244 = vpack.c.bf16 %v1170, %v1166
      %v1245 = vpack.c.bf16 %v1176, %v1172
      %v1246 = vpack.c.bf16 %v1178, %v1174
      %v1247 = vpack.c.bf16 %v1184, %v1180
      %v1248 = vpack.c.bf16 %v1186, %v1182
      %v1249 = vpack.c.bf16 %v1192, %v1188
      %v1250 = vpack.c.bf16 %v1194, %v1190
      %v1251 = vpack.c.bf16 %v1200, %v1196
      %v1252 = vpack.c.bf16 %v1202, %v1198
      %v1253 = vpack.c.bf16 %v1208, %v1204
      %v1254 = vpack.c.bf16 %v1210, %v1206
      %v1255 = vpack.c.bf16 %v1216, %v1212
      %v1256 = vpack.c.bf16 %v1218, %v1214
      %v1257 = vpack.c.bf16 %v1224, %v1220
      %v1258 = vpack.c.bf16 %v1226, %v1222
      %v1259 = vld [vmem:[#allocation3] sm:$0xff]
      %v1260 = vld [vmem:[#allocation3 + $0x8] sm:$0x11]
      %v1263 = vunpack.c.l.b16 %v1259
      %v1264 = vunpack.c.h.b16 %v1259
      %v1265 = vunpack.c.l.b16 %v1260
      %v1266 = vunpack.c.h.b16 %v1260
      %v1267 = vpack.c.b16 %v1265, %v1263
      %v1268 = vpack.c.b16 %v1266, %v1264
      %1271 = vmatprep.subr.bf16.mxu0 %v1242
      %1272 = vmatpush1.bf16.msra.mxu0 %v1241
      %1273 = vmatprep.subr.bf16.mxu0 %v1240
      %1274 = vmatpush1.bf16.msra.mxu0 %v1239
      %1275 = vmatprep.subr.bf16.mxu0 %v1238
      %1276 = vmatpush1.bf16.msra.mxu0 %v1237
      %1277 = vmatprep.subr.bf16.mxu0 %v1236
      %1278 = vmatpush1.bf16.msra.mxu0 %v1235
      %1279 = vmatprep.subr.bf16.mxu0 %v1234
      %1280 = vmatpush1.bf16.msra.mxu0 %v1233
      %1281 = vmatprep.subr.bf16.mxu0 %v1232
      %1282 = vmatpush1.bf16.msra.mxu0 %v1231
      %1283 = vmatprep.subr.bf16.mxu0 %v1230
      %1284 = vmatpush1.bf16.msra.mxu0 %v1229
      %1285 = vmatprep.subr.bf16.mxu0 %v1228
      %1286 = vmatpush1.bf16.msra.mxu0 %v1227
      %1287 = vmatprep.subr.bf16.mxu0 %v1258
      %1288 = vmatpush2.bf16.msra.mxu0 %v1257
      %1289 = vmatprep.subr.bf16.mxu0 %v1256
      %1290 = vmatpush2.bf16.msra.mxu0 %v1255
      %1291 = vmatprep.subr.bf16.mxu0 %v1254
      %1292 = vmatpush2.bf16.msra.mxu0 %v1253
      %1293 = vmatprep.subr.bf16.mxu0 %v1252
      %1294 = vmatpush2.bf16.msra.mxu0 %v1251
      %1295 = vmatprep.subr.bf16.mxu0 %v1250
      %1296 = vmatpush2.bf16.msra.mxu0 %v1249
      %1297 = vmatprep.subr.bf16.mxu0 %v1248
      %1298 = vmatpush2.bf16.msra.mxu0 %v1247
      %1299 = vmatprep.subr.bf16.mxu0 %v1246
      %1300 = vmatpush2.bf16.msra.mxu0 %v1245
      %1301 = vmatprep.subr.bf16.mxu0 %v1244
      %1302 = vmatpush2.bf16.msra.mxu0 %v1243
      %1303 = vmatprep.mubr.bf16.mxu0 %v1268
      %1304 = vmatmul.mubr.bf16.gmra.mxu0 %v1267
      %v1305 = vpop.f32.mrf.mxu0
      %v1306 = vadd.f32 0.0, %v1305
      %v1307 = vpop.f32.mrf.mxu0
      %v1308 = vadd.f32 0.0, %v1307
      %v1309 = vpop.f32.mrf.mxu0
      %v1310 = vadd.f32 0.0, %v1309
      %v1311 = vpop.f32.mrf.mxu0
      %v1312 = vadd.f32 0.0, %v1311
      %1313 = vdwg.mxu0
      %v1314 = vrcp.pop %v1310
      %v1315 = vrcp.pop %v1312
      %v1316 = vmul.f32 %v1310, %v1314
      %v1317 = vmul.f32 %v1312, %v1315
      %v1318 = vsub.f32 2.0, %v1316
      %v1319 = vsub.f32 2.0, %v1317
      %v1320 = vmul.f32 %v1314, %v1318
      %v1321 = vmul.f32 %v1315, %v1319
      %1322 = vst [vmem:[%s307] sm:$0xff] %v512
      %1323 = vst [vmem:[%s307 + $0x8] sm:$0xff] %v513
      %v1324 = vlaneseq
      %v1325 = vshrl.u32 %v1324, 7
      %v1326 = vsub.s32 0, %v1325
      %v1327 = vrot.slane %v1320, %v1326
      %v1328 = vlaneseq
      %v1329 = vshrl.u32 %v1328, 7
      %v1330 = vsub.s32 0, %v1329
      %v1331 = vrot.slane %v1321, %v1330
      %v1332 = vmul.f32 %v1306, %v1327
      %v1333 = vmul.f32 %v1308, %v1331
      %1334 = vst [vmem:[%s307 + $0x10] sm:$0xff] %v1332
      %1335 = vst [vmem:[%s307 + $0x18] sm:$0xff] %v1333
      %s1336 = smul.u32 2, %s22
      %p1337 = scmp.lt.s32.totalorder %s20, 1
      %s1338 = scalar_select %p1337, %s20, 1
      %p1339 = scmp.lt.s32.totalorder %s21, 1
      %s1340 = scalar_select %p1339, %s21, 1
      %p1341 = scmp.lt.s32.totalorder %s1336, 1
      %s1342 = scalar_select %p1341, %s1336, 1
      %s1343 = smul.addr %s1340, 4
      %s1344 = sadd.s32 %s1342, %s1343
      %s1345 = smul.addr %s1338, 8
      %s1346 = sadd.s32 %s1344, %s1345
      %s1347 = smul.addr %s1346, 8
      %s1348 = scalar_lea.vmem %s4, %s1347
      // Predicated region
      $region41: #{coattention_module.1} parent=35 // pred_check
        %p1349 = pneg %p158
      $region42: #{coattention_module.1} parent=35 // pred_check_branch
        %1351 = sbr.rel (%p1349) target = $region44
      $region43: #{coattention_module.1} parent=35 // pred_region
        %s1352 = smul.u32 2, %s22
      $region44: #{coattention_module.1} parent=35 // pred_fallthru
        _
    $region36: #{coattention_module.1} parent=5 // pred_fallthru
      _
    %p1353 = scmp.le.s32.totalorder 2, %s10
    // Predicated region
    $region45: #{coattention_module.1} parent=5 // pred_check
      %p1354 = pneg %p1353
    $region46: #{coattention_module.1} parent=5 // pred_check_branch
      %1356 = sbr.rel (%p1354) target = $region48
    $region47: #{coattention_module.1} parent=5 // pred_region
      %s1357 = ssub.s32 %s10, 2
      // Predicated region
      $region49: #{coattention_module.1} parent=47 // pred_check
        %p1358 = pneg %p164
      $region50: #{coattention_module.1} parent=47 // pred_check_branch
        %1360 = sbr.rel (%p1358) target = $region52
      $region51: #{coattention_module.1} parent=47 // pred_region
        %s1361 = smul.u32 2, %s25
        %p1362 = scmp.lt.s32.totalorder %s23, 1
        %s1363 = scalar_select %p1362, %s23, 1
        %p1364 = scmp.lt.s32.totalorder %s24, 1
        %s1365 = scalar_select %p1364, %s24, 1
        %p1366 = scmp.lt.s32.totalorder %s1361, 1
        %s1367 = scalar_select %p1366, %s1361, 1
        %s1368 = smul.addr %s1365, 4
        %s1369 = sadd.s32 %s1367, %s1368
        %s1370 = smul.addr %s1363, 8
        %s1371 = sadd.s32 %s1369, %s1370
        %s1372 = smul.addr %s1371, 8
        %s1373 = scalar_lea.vmem %s4, %s1372
      $region52: #{coattention_module.1} parent=47 // pred_fallthru
        _
    $region48: #{coattention_module.1} parent=5 // pred_fallthru
      _
  $region6: #{coattention_module.1} parent=0 // loop_footer
    %s14 = sadd.s32 1, %s10
  $region7: #{coattention_module.1} parent=0 // loop_footer_branch
    %9 = sbr.rel target = $region3
  $region8: #{coattention_module.1} parent=0 // loop_exit
    _

</llo_original>
